<compile_context>
chip_gen: v6e
topology: v6e:2x2x1
jax: 0.10.0
libtpu: 0.0.40
codegen_flags: <defaults>
</compile_context>

<pallas_src>
import math

import jax
import jax.numpy as jnp
import numpy as np
from jax import lax
from jax.experimental import pallas as pl
from jax.experimental.pallas import tpu as pltpu


# ----------------------------------------------------------------------------
# Fused kernel: all LSTM layers (wavefront-interleaved) + classifier.
# ----------------------------------------------------------------------------
def _make_fused_kernel(n_layer, T, Bp, H):
    """Build the fused kernel for a fixed (n_layer, T, Bp, H)."""
    L = n_layer
    total = T + L - 1                  # number of wavefront steps
    steady_lo = L - 1                  # first step where all L layers are active
    steady_hi = max(T, steady_lo)      # empty steady region when T < L
    trip = steady_hi - steady_lo

    # Unroll policy tied to per-step vreg footprint, not just T (full unroll of
    # large (Bp, 4H) gate intermediates can flip into a spill-bound regime).
    step_vregs = L * pl.cdiv(Bp, 8) * pl.cdiv(4 * H, 128)
    if trip <= 16 and step_vregs <= 8:
        unroll = True
    else:
        unroll = max(1, min(4, trip))

    def kernel(x_ref, *rest):
        # rest = [w_ih_0, w_hh_0, b_0, ..., w_ih_{L-1}, w_hh_{L-1}, b_{L-1},
        #         w_cls, b_cls, out_ref, gx_sc]
        lstm_refs = rest[: 3 * L]
        w_cls_ref = rest[3 * L + 0]
        b_cls_ref = rest[3 * L + 1]
        out_ref = rest[3 * L + 2]
        gx_sc = rest[3 * L + 3]        # (T*Bp, 4H) f32: hoisted layer-0 gates

        w_ih_refs = [lstm_refs[3 * l + 0] for l in range(L)]   # (D_in, 4H) bf16
        w_hh_refs = [lstm_refs[3 * l + 1] for l in range(L)]   # (H,    4H) bf16
        b_refs = [lstm_refs[3 * l + 2] for l in range(L)]      # (1,    4H) f32

        # ---- Hoisted layer-0 input projection: ONE big MXU matmul for all T.
        gx_sc[...] = (
            jnp.dot(x_ref[...], w_ih_refs[0][...],
                    preferred_element_type=jnp.float32)
            + b_refs[0][...]
        )

        def cell(gates, c_prev):
            # Single full-width sigmoid (one EUP pass over (Bp, 4H)); the g-gate
            # tanh is recovered as 2*sigmoid(2x) - 1 because the wrapper
            # pre-doubled the g-gate columns of W_ih / W_hh / bias.
            sg = jax.nn.sigmoid(gates)
            i_g = sg[:, 0 * H:1 * H]
            f_g = sg[:, 1 * H:2 * H]
            g_g = 2.0 * sg[:, 2 * H:3 * H] - 1.0
            o_g = sg[:, 3 * H:4 * H]
            c_new = f_g * c_prev + i_g * g_g
            h_new = o_g * jnp.tanh(c_new)
            return h_new, c_new

        def layer_step(l, t_row, h_below, h_prev, c_prev):
            # TODO(synk): keep W_hh MXU-resident across the time loop via
            # pltpu.matmul_push_rhs / matmul_acc_lhs / matmul_pop to remove the
            # per-step RHS push from the serial critical path.
            gr = jnp.dot(h_prev.astype(jnp.bfloat16), w_hh_refs[l][...],
                         preferred_element_type=jnp.float32)
            if l == 0:
                gates = gx_sc[pl.ds(t_row, Bp), :] + gr
            else:
                gi = jnp.dot(h_below.astype(jnp.bfloat16), w_ih_refs[l][...],
                             preferred_element_type=jnp.float32)
                gates = gi + gr + b_refs[l][...]
            return cell(gates, c_prev)

        def wavefront(s_idx, hs, cs, static):
            # Wavefront step s: layer l handles timestep t = s - l.  Every layer
            # reads the PREVIOUS wavefront's carried states, so the per-step
            # cells across layers are mutually independent (ILP for the
            # scheduler; chain length ~T+L instead of T*L).
            new_hs, new_cs = list(hs), list(cs)
            for l in range(L):
                if static and not (0 <= s_idx - l < T):
                    continue
                if l == 0:
                    row = (s_idx * Bp if static
                           else pl.multiple_of(s_idx * Bp, 8))
                    h_new, c_new = layer_step(0, row, None, hs[0], cs[0])
                else:
                    h_new, c_new = layer_step(l, None, hs[l - 1], hs[l], cs[l])
                new_hs[l], new_cs[l] = h_new, c_new
            return new_hs, new_cs

        zeros = jnp.zeros((Bp, H), jnp.float32)
        hs = [zeros] * L
        cs = [zeros] * L

        # Prologue (ragged wavefront start): static steps, Python-unrolled.
        for s_idx in range(0, steady_lo):
            hs, cs = wavefront(s_idx, hs, cs, static=True)

        # Steady region: all L layers active every iteration.
        if trip > 0:
            def body(s_idx, carry):
                hs_c, cs_c = carry
                hs_n, cs_n = wavefront(s_idx, list(hs_c), list(cs_c),
                                       static=False)
                return (tuple(hs_n), tuple(cs_n))

            hs_t, cs_t = lax.fori_loop(steady_lo, steady_hi, body,
                                       (tuple(hs), tuple(cs)), unroll=unroll)
            hs, cs = list(hs_t), list(cs_t)

        # Epilogue (ragged wavefront tail): static steps, Python-unrolled.
        for s_idx in range(steady_hi, total):
            hs, cs = wavefront(s_idx, hs, cs, static=True)

        # ---- Fused classifier on h_{L-1, T-1}; output lane-padded to 128.
        out_ref[...] = (
            jnp.dot(hs[L - 1].astype(jnp.bfloat16), w_cls_ref[...],
                    preferred_element_type=jnp.float32)
            + b_cls_ref[...]
        )

    return kernel


# ----------------------------------------------------------------------------
# g-gate pre-scaling: exact *2 on the g columns so the kernel can use one
# full-width sigmoid and recover tanh(x) = 2*sigmoid(2x) - 1.
# ----------------------------------------------------------------------------
def _prescale_g_gate(lstm_params):
    scaled = []
    for (w_ih_t, w_hh_t, b_row) in lstm_params:
        H = w_hh_t.shape[0]
        sl = slice(2 * H, 3 * H)
        scaled.append((
            w_ih_t.at[:, sl].multiply(2),
            w_hh_t.at[:, sl].multiply(2),
            b_row.at[:, sl].multiply(2),
        ))
    return scaled


# ----------------------------------------------------------------------------
# Full model forward (matches Rnn.forward semantics).
# ----------------------------------------------------------------------------
def rnn_forward(x, params):
    """x: (B, T, D) float32, batch_first like PyTorch. Returns (B, n_class)."""
    B, T, D = x.shape
    lstm = params["lstm"]
    n_layer = len(lstm)
    H = lstm[0][1].shape[0]
    C = params["w_cls_t"].shape[1]

    # Pad batch to the f32 sublane quantum (8) so every dynamic sublane slice
    # gx[t*Bp : (t+1)*Bp] is aligned.  Padded rows evolve independently (no
    # cross-batch mixing in an LSTM) and are dropped at the end.
    # NOTE(perf): callers should batch *real* samples up toward MXU row height
    # (128 on v5e, 256 on v6e/v7x) per call — throughput scales almost linearly
    # with Bp there, while zero padding only adds dead VPU/EUP work.
    Bp = ((B + 7) // 8) * 8
    if Bp != B:
        x = jnp.pad(x, ((0, Bp - B), (0, 0), (0, 0)))

    # Time-major flatten: row t*Bp + b  <->  (timestep t, batch b).
    x_tm = jnp.transpose(x, (1, 0, 2)).reshape(T * Bp, D).astype(jnp.bfloat16)

    # Pre-scale g-gate columns (in production do this once at init time).
    lstm_k = _prescale_g_gate(lstm)
    flat_lstm = []
    for (w_ih_t, w_hh_t, b_row) in lstm_k:
        flat_lstm += [w_ih_t, w_hh_t, b_row]

    # Lane-dense classifier: pad n_class up to 128 columns so the final store
    # is an unmasked vst; sliced back to C below.
    Cp = ((C + 127) // 128) * 128
    w_cls_p = jnp.pad(params["w_cls_t"], ((0, 0), (0, Cp - C)))
    b_cls_p = jnp.pad(params["b_cls_row"], ((0, 0), (0, Cp - C)))

    n_inputs = 1 + 3 * n_layer + 2
    kernel = _make_fused_kernel(n_layer, T, Bp, H)

    # Explicit VMEM budget: everything is resident in VMEM for the whole call.
    # (v5e scoped default is only 16 MiB; v7x has 64 MiB physical.)
    need = (
        x_tm.size * 2
        + T * Bp * 4 * H * 4
        + sum(int(w.size) * w.dtype.itemsize for w in flat_lstm)
        + w_cls_p.size * 2 + b_cls_p.size * 4
        + Bp * Cp * 4
    )
    vmem_limit = int(min(64 << 20, max(2 * need + (2 << 20), 16 << 20)))
    # TODO(synk): add a T-chunked grid (h/c carried in scratch) for very long
    # sequences, and a batch-split "parallel" grid axis to use both v7x TCs.

    out_p = pl.pallas_call(
        kernel,
        out_shape=jax.ShapeDtypeStruct((Bp, Cp), jnp.float32),
        in_specs=[pl.BlockSpec(memory_space=pltpu.MemorySpace.VMEM)] * n_inputs,
        out_specs=pl.BlockSpec(memory_space=pltpu.MemorySpace.VMEM),
        scratch_shapes=[
            pltpu.VMEM((T * Bp, 4 * H), jnp.float32),  # hoisted layer-0 gates
        ],
        compiler_params=pltpu.CompilerParams(vmem_limit_bytes=vmem_limit),
    )(x_tm, *flat_lstm, w_cls_p, b_cls_p)

    return out_p[:B, :C]


# ----------------------------------------------------------------------------
# Deterministic parameter init (PyTorch-style uniform(-1/sqrt(H), 1/sqrt(H))).
# Weights stored transposed + bfloat16 (MXU operands); biases stay f32.
# ----------------------------------------------------------------------------
def init_params(key, in_dim, hidden_dim, n_layer, n_class):
    lstm_params = []
    k_lstm = 1.0 / math.sqrt(hidden_dim)
    for layer in range(n_layer):
        layer_in = in_dim if layer == 0 else hidden_dim
        key, k1, k2, k3, k4 = jax.random.split(key, 5)
        w_ih = jax.random.uniform(k1, (4 * hidden_dim, layer_in),
                                  minval=-k_lstm, maxval=k_lstm, dtype=jnp.float32)
        w_hh = jax.random.uniform(k2, (4 * hidden_dim, hidden_dim),
                                  minval=-k_lstm, maxval=k_lstm, dtype=jnp.float32)
        b_ih = jax.random.uniform(k3, (4 * hidden_dim,),
                                  minval=-k_lstm, maxval=k_lstm, dtype=jnp.float32)
        b_hh = jax.random.uniform(k4, (4 * hidden_dim,),
                                  minval=-k_lstm, maxval=k_lstm, dtype=jnp.float32)
        lstm_params.append((
            w_ih.T.astype(jnp.bfloat16),            # (D_in, 4H)
            w_hh.T.astype(jnp.bfloat16),            # (H,    4H)
            (b_ih + b_hh).reshape(1, -1),           # (1,    4H) f32
        ))

    k_lin = 1.0 / math.sqrt(hidden_dim)
    key, k5, k6 = jax.random.split(key, 3)
    w_cls = jax.random.uniform(k5, (n_class, hidden_dim),
                               minval=-k_lin, maxval=k_lin, dtype=jnp.float32)
    b_cls = jax.random.uniform(k6, (n_class,),
                               minval=-k_lin, maxval=k_lin, dtype=jnp.float32)
    return {
        "lstm": lstm_params,
        "w_cls_t": w_cls.T.astype(jnp.bfloat16),    # (H, C)
        "b_cls_row": b_cls.reshape(1, -1),          # (1, C) f32
    }


# ----------------------------------------------------------------------------
# Pure-JAX reference with the SAME mixed precision (bf16 matmul operands,
# f32 accumulation / element-wise), canonical gate math, for correctness only.
# ----------------------------------------------------------------------------
def rnn_forward_ref(x, params):
    x_t = jnp.transpose(x, (1, 0, 2))  # (T, B, D)
    B = x_t.shape[1]
    h_seq = x_t
    for (w_ih_t, w_hh_t, bias_row) in params["lstm"]:
        H = w_hh_t.shape[0]

        def step(carry, x_step, w_ih_t=w_ih_t, w_hh_t=w_hh_t,
                 bias_row=bias_row, H=H):
            h, c = carry
            gates = (
                jnp.dot(x_step.astype(jnp.bfloat16), w_ih_t,
                        preferred_element_type=jnp.float32)
                + jnp.dot(h.astype(jnp.bfloat16), w_hh_t,
                          preferred_element_type=jnp.float32)
                + bias_row[0]
            )
            i_g = jax.nn.sigmoid(gates[:, 0 * H:1 * H])
            f_g = jax.nn.sigmoid(gates[:, 1 * H:2 * H])
            g_g = jnp.tanh(gates[:, 2 * H:3 * H])
            o_g = jax.nn.sigmoid(gates[:, 3 * H:4 * H])
            c = f_g * c + i_g * g_g
            h = o_g * jnp.tanh(c)
            return (h, c), h

        init = (jnp.zeros((B, H), jnp.float32), jnp.zeros((B, H), jnp.float32))
        _, h_seq = lax.scan(step, init, h_seq)
    h_last = h_seq[-1]
    return (jnp.dot(h_last.astype(jnp.bfloat16), params["w_cls_t"],
                    preferred_element_type=jnp.float32)
            + params["b_cls_row"][0])


if __name__ == "__main__":
    # Small shapes consistent with the module's forward: (batch, seq, in_dim).
    B, T = 2, 8
    in_dim, hidden_dim, n_layer, n_class = 16, 32, 2, 10

    key = jax.random.PRNGKey(0)
    key, kx, kp = jax.random.split(key, 3)
    x = jax.random.normal(kx, (B, T, in_dim), dtype=jnp.float32)
    params = init_params(kp, in_dim, hidden_dim, n_layer, n_class)

    out = rnn_forward(x, params)
    out = jax.block_until_ready(out)
    assert out.shape == (B, n_class)

    ref = jax.block_until_ready(rnn_forward_ref(x, params))
    np.testing.assert_allclose(np.asarray(out), np.asarray(ref),
                               rtol=2e-3, atol=2e-3)

    print("KERNEL_OK")
</pallas_src>

<mosaic_0001>
module attributes {stable_mosaic.version = 11 : i64} {
  func.func @kernel(%arg0: memref<64x16xbf16, #tpu.memory_space<vmem>>, %arg1: memref<16x128xbf16, #tpu.memory_space<vmem>>, %arg2: memref<32x128xbf16, #tpu.memory_space<vmem>>, %arg3: memref<1x128xf32, #tpu.memory_space<vmem>>, %arg4: memref<32x128xbf16, #tpu.memory_space<vmem>>, %arg5: memref<32x128xbf16, #tpu.memory_space<vmem>>, %arg6: memref<1x128xf32, #tpu.memory_space<vmem>>, %arg7: memref<32x128xbf16, #tpu.memory_space<vmem>>, %arg8: memref<1x128xf32, #tpu.memory_space<vmem>>, %arg9: memref<8x128xf32, #tpu.memory_space<vmem>>, %arg10: memref<64x128xf32, #tpu.memory_space<vmem>>) attributes {dimension_semantics = [], scalar_prefetch = 0 : i64, scratch_operands = 1 : i64, tpu.core_type = #tpu.core_type<tc>} {
    %c0 = arith.constant 0 : index
    %c0_0 = arith.constant 0 : index
    %0 = vector.load %arg0[%c0, %c0_0] : memref<64x16xbf16, #tpu.memory_space<vmem>>, vector<64x16xbf16>
    %c0_1 = arith.constant 0 : index
    %c0_2 = arith.constant 0 : index
    %1 = vector.load %arg1[%c0_1, %c0_2] : memref<16x128xbf16, #tpu.memory_space<vmem>>, vector<16x128xbf16>
    %cst = arith.constant dense<0.000000e+00> : vector<64x128xf32>
    %2 = tpu.matmul %0, %1, %cst {dimension_numbers = #tpu.dot_dimension_numbers<[1], [0], [0], [1], [0, 0, 1, 1], [], []>} : vector<64x16xbf16>, vector<16x128xbf16>, vector<64x128xf32> -> vector<64x128xf32>
    %c0_3 = arith.constant 0 : index
    %c0_4 = arith.constant 0 : index
    %3 = vector.load %arg3[%c0_3, %c0_4] : memref<1x128xf32, #tpu.memory_space<vmem>>, vector<1x128xf32>
    %4 = vector.broadcast %3 : vector<1x128xf32> to vector<64x128xf32>
    %5 = arith.addf %2, %4 : vector<64x128xf32>
    %c0_5 = arith.constant 0 : index
    %c0_6 = arith.constant 0 : index
    %6 = vector.load %arg10[%c0_5, %c0_6] : memref<64x128xf32, #tpu.memory_space<vmem>>, vector<64x128xf32>
    tpu.vector_store %arg10[%c0_5, %c0_6], %5 {strides = array<i32>} : memref<64x128xf32, #tpu.memory_space<vmem>>, vector<64x128xf32>,
    %cst_7 = arith.constant 0.000000e+00 : f32
    %7 = vector.broadcast %cst_7 : f32 to vector<8x32xf32>
    %8 = arith.truncf %7 : vector<8x32xf32> to vector<8x32xbf16>
    %c0_8 = arith.constant 0 : index
    %c0_9 = arith.constant 0 : index
    %9 = vector.load %arg2[%c0_8, %c0_9] : memref<32x128xbf16, #tpu.memory_space<vmem>>, vector<32x128xbf16>
    %cst_10 = arith.constant dense<0.000000e+00> : vector<8x128xf32>
    %10 = tpu.matmul %8, %9, %cst_10 {dimension_numbers = #tpu.dot_dimension_numbers<[1], [0], [0], [1], [0, 0, 1, 1], [], []>} : vector<8x32xbf16>, vector<32x128xbf16>, vector<8x128xf32> -> vector<8x128xf32>
    %c0_11 = arith.constant 0 : index
    %c0_12 = arith.constant 0 : index
    %11 = vector.load %arg10[%c0_11, %c0_12] : memref<64x128xf32, #tpu.memory_space<vmem>>, vector<8x128xf32>
    %12 = arith.addf %11, %10 : vector<8x128xf32>
    %13 = arith.negf %12 : vector<8x128xf32>
    %14 = math.exp %13 : vector<8x128xf32>
    %cst_13 = arith.constant 1.000000e+00 : f32
    %15 = vector.broadcast %cst_13 : f32 to vector<8x128xf32>
    %16 = arith.addf %15, %14 : vector<8x128xf32>
    %17 = arith.divf %15, %16 : vector<8x128xf32>
    %18 = vector.extract_strided_slice %17 {offsets = [0, 0], sizes = [8, 32], strides = [1, 1]} : vector<8x128xf32> to vector<8x32xf32>
    %19 = vector.extract_strided_slice %17 {offsets = [0, 32], sizes = [8, 32], strides = [1, 1]} : vector<8x128xf32> to vector<8x32xf32>
    %20 = vector.extract_strided_slice %17 {offsets = [0, 64], sizes = [8, 32], strides = [1, 1]} : vector<8x128xf32> to vector<8x32xf32>
    %cst_14 = arith.constant 2.000000e+00 : f32
    %21 = vector.broadcast %cst_14 : f32 to vector<8x32xf32>
    %22 = arith.mulf %21, %20 : vector<8x32xf32>
    %cst_15 = arith.constant 1.000000e+00 : f32
    %23 = vector.broadcast %cst_15 : f32 to vector<8x32xf32>
    %24 = arith.subf %22, %23 : vector<8x32xf32>
    %25 = vector.extract_strided_slice %17 {offsets = [0, 96], sizes = [8, 32], strides = [1, 1]} : vector<8x128xf32> to vector<8x32xf32>
    %26 = arith.mulf %19, %7 : vector<8x32xf32>
    %27 = arith.mulf %18, %24 : vector<8x32xf32>
    %28 = arith.addf %26, %27 : vector<8x32xf32>
    %29 = math.tanh %28 : vector<8x32xf32>
    %30 = arith.mulf %25, %29 : vector<8x32xf32>
    %c1_i32 = arith.constant 1 : i32
    %c8_i32 = arith.constant 8 : i32
    %31 = arith.muli %c1_i32, %c8_i32 : i32
    %32 = tpu.assume_multiple %31, 8 : i32
    %33 = arith.truncf %30 : vector<8x32xf32> to vector<8x32xbf16>
    %c0_16 = arith.constant 0 : index
    %c0_17 = arith.constant 0 : index
    %34 = vector.load %arg2[%c0_16, %c0_17] : memref<32x128xbf16, #tpu.memory_space<vmem>>, vector<32x128xbf16>
    %cst_18 = arith.constant dense<0.000000e+00> : vector<8x128xf32>
    %35 = tpu.matmul %33, %34, %cst_18 {dimension_numbers = #tpu.dot_dimension_numbers<[1], [0], [0], [1], [0, 0, 1, 1], [], []>} : vector<8x32xbf16>, vector<32x128xbf16>, vector<8x128xf32> -> vector<8x128xf32>
    %36 = arith.index_cast %32 : i32 to index
    %c0_19 = arith.constant 0 : index
    %37 = vector.load %arg10[%36, %c0_19] : memref<64x128xf32, #tpu.memory_space<vmem>>, vector<8x128xf32>
    %38 = arith.addf %37, %35 : vector<8x128xf32>
    %39 = arith.negf %38 : vector<8x128xf32>
    %40 = math.exp %39 : vector<8x128xf32>
    %cst_20 = arith.constant 1.000000e+00 : f32
    %41 = vector.broadcast %cst_20 : f32 to vector<8x128xf32>
    %42 = arith.addf %41, %40 : vector<8x128xf32>
    %43 = arith.divf %41, %42 : vector<8x128xf32>
    %44 = vector.extract_strided_slice %43 {offsets = [0, 0], sizes = [8, 32], strides = [1, 1]} : vector<8x128xf32> to vector<8x32xf32>
    %45 = vector.extract_strided_slice %43 {offsets = [0, 32], sizes = [8, 32], strides = [1, 1]} : vector<8x128xf32> to vector<8x32xf32>
    %46 = vector.extract_strided_slice %43 {offsets = [0, 64], sizes = [8, 32], strides = [1, 1]} : vector<8x128xf32> to vector<8x32xf32>
    %cst_21 = arith.constant 2.000000e+00 : f32
    %47 = vector.broadcast %cst_21 : f32 to vector<8x32xf32>
    %48 = arith.mulf %47, %46 : vector<8x32xf32>
    %cst_22 = arith.constant 1.000000e+00 : f32
    %49 = vector.broadcast %cst_22 : f32 to vector<8x32xf32>
    %50 = arith.subf %48, %49 : vector<8x32xf32>
    %51 = vector.extract_strided_slice %43 {offsets = [0, 96], sizes = [8, 32], strides = [1, 1]} : vector<8x128xf32> to vector<8x32xf32>
    %52 = arith.mulf %45, %28 : vector<8x32xf32>
    %53 = arith.mulf %44, %50 : vector<8x32xf32>
    %54 = arith.addf %52, %53 : vector<8x32xf32>
    %55 = math.tanh %54 : vector<8x32xf32>
    %56 = arith.mulf %51, %55 : vector<8x32xf32>
    %57 = arith.truncf %7 : vector<8x32xf32> to vector<8x32xbf16>
    %c0_23 = arith.constant 0 : index
    %c0_24 = arith.constant 0 : index
    %58 = vector.load %arg5[%c0_23, %c0_24] : memref<32x128xbf16, #tpu.memory_space<vmem>>, vector<32x128xbf16>
    %cst_25 = arith.constant dense<0.000000e+00> : vector<8x128xf32>
    %59 = tpu.matmul %57, %58, %cst_25 {dimension_numbers = #tpu.dot_dimension_numbers<[1], [0], [0], [1], [0, 0, 1, 1], [], []>} : vector<8x32xbf16>, vector<32x128xbf16>, vector<8x128xf32> -> vector<8x128xf32>
    %60 = arith.truncf %30 : vector<8x32xf32> to vector<8x32xbf16>
    %c0_26 = arith.constant 0 : index
    %c0_27 = arith.constant 0 : index
    %61 = vector.load %arg4[%c0_26, %c0_27] : memref<32x128xbf16, #tpu.memory_space<vmem>>, vector<32x128xbf16>
    %cst_28 = arith.constant dense<0.000000e+00> : vector<8x128xf32>
    %62 = tpu.matmul %60, %61, %cst_28 {dimension_numbers = #tpu.dot_dimension_numbers<[1], [0], [0], [1], [0, 0, 1, 1], [], []>} : vector<8x32xbf16>, vector<32x128xbf16>, vector<8x128xf32> -> vector<8x128xf32>
    %63 = arith.addf %62, %59 : vector<8x128xf32>
    %c0_29 = arith.constant 0 : index
    %c0_30 = arith.constant 0 : index
    %64 = vector.load %arg6[%c0_29, %c0_30] : memref<1x128xf32, #tpu.memory_space<vmem>>, vector<1x128xf32>
    %65 = vector.broadcast %64 : vector<1x128xf32> to vector<8x128xf32>
    %66 = arith.addf %63, %65 : vector<8x128xf32>
    %67 = arith.negf %66 : vector<8x128xf32>
    %68 = math.exp %67 : vector<8x128xf32>
    %cst_31 = arith.constant 1.000000e+00 : f32
    %69 = vector.broadcast %cst_31 : f32 to vector<8x128xf32>
    %70 = arith.addf %69, %68 : vector<8x128xf32>
    %71 = arith.divf %69, %70 : vector<8x128xf32>
    %72 = vector.extract_strided_slice %71 {offsets = [0, 0], sizes = [8, 32], strides = [1, 1]} : vector<8x128xf32> to vector<8x32xf32>
    %73 = vector.extract_strided_slice %71 {offsets = [0, 32], sizes = [8, 32], strides = [1, 1]} : vector<8x128xf32> to vector<8x32xf32>
    %74 = vector.extract_strided_slice %71 {offsets = [0, 64], sizes = [8, 32], strides = [1, 1]} : vector<8x128xf32> to vector<8x32xf32>
    %cst_32 = arith.constant 2.000000e+00 : f32
    %75 = vector.broadcast %cst_32 : f32 to vector<8x32xf32>
    %76 = arith.mulf %75, %74 : vector<8x32xf32>
    %cst_33 = arith.constant 1.000000e+00 : f32
    %77 = vector.broadcast %cst_33 : f32 to vector<8x32xf32>
    %78 = arith.subf %76, %77 : vector<8x32xf32>
    %79 = vector.extract_strided_slice %71 {offsets = [0, 96], sizes = [8, 32], strides = [1, 1]} : vector<8x128xf32> to vector<8x32xf32>
    %80 = arith.mulf %73, %7 : vector<8x32xf32>
    %81 = arith.mulf %72, %78 : vector<8x32xf32>
    %82 = arith.addf %80, %81 : vector<8x32xf32>
    %83 = math.tanh %82 : vector<8x32xf32>
    %84 = arith.mulf %79, %83 : vector<8x32xf32>
    %c2_i32 = arith.constant 2 : i32
    %c8_i32_34 = arith.constant 8 : i32
    %85 = arith.muli %c2_i32, %c8_i32_34 : i32
    %86 = tpu.assume_multiple %85, 8 : i32
    %87 = arith.truncf %56 : vector<8x32xf32> to vector<8x32xbf16>
    %c0_35 = arith.constant 0 : index
    %c0_36 = arith.constant 0 : index
    %88 = vector.load %arg2[%c0_35, %c0_36] : memref<32x128xbf16, #tpu.memory_space<vmem>>, vector<32x128xbf16>
    %cst_37 = arith.constant dense<0.000000e+00> : vector<8x128xf32>
    %89 = tpu.matmul %87, %88, %cst_37 {dimension_numbers = #tpu.dot_dimension_numbers<[1], [0], [0], [1], [0, 0, 1, 1], [], []>} : vector<8x32xbf16>, vector<32x128xbf16>, vector<8x128xf32> -> vector<8x128xf32>
    %90 = arith.index_cast %86 : i32 to index
    %c0_38 = arith.constant 0 : index
    %91 = vector.load %arg10[%90, %c0_38] : memref<64x128xf32, #tpu.memory_space<vmem>>, vector<8x128xf32>
    %92 = arith.addf %91, %89 : vector<8x128xf32>
    %93 = arith.negf %92 : vector<8x128xf32>
    %94 = math.exp %93 : vector<8x128xf32>
    %cst_39 = arith.constant 1.000000e+00 : f32
    %95 = vector.broadcast %cst_39 : f32 to vector<8x128xf32>
    %96 = arith.addf %95, %94 : vector<8x128xf32>
    %97 = arith.divf %95, %96 : vector<8x128xf32>
    %98 = vector.extract_strided_slice %97 {offsets = [0, 0], sizes = [8, 32], strides = [1, 1]} : vector<8x128xf32> to vector<8x32xf32>
    %99 = vector.extract_strided_slice %97 {offsets = [0, 32], sizes = [8, 32], strides = [1, 1]} : vector<8x128xf32> to vector<8x32xf32>
    %100 = vector.extract_strided_slice %97 {offsets = [0, 64], sizes = [8, 32], strides = [1, 1]} : vector<8x128xf32> to vector<8x32xf32>
    %cst_40 = arith.constant 2.000000e+00 : f32
    %101 = vector.broadcast %cst_40 : f32 to vector<8x32xf32>
    %102 = arith.mulf %101, %100 : vector<8x32xf32>
    %cst_41 = arith.constant 1.000000e+00 : f32
    %103 = vector.broadcast %cst_41 : f32 to vector<8x32xf32>
    %104 = arith.subf %102, %103 : vector<8x32xf32>
    %105 = vector.extract_strided_slice %97 {offsets = [0, 96], sizes = [8, 32], strides = [1, 1]} : vector<8x128xf32> to vector<8x32xf32>
    %106 = arith.mulf %99, %54 : vector<8x32xf32>
    %107 = arith.mulf %98, %104 : vector<8x32xf32>
    %108 = arith.addf %106, %107 : vector<8x32xf32>
    %109 = math.tanh %108 : vector<8x32xf32>
    %110 = arith.mulf %105, %109 : vector<8x32xf32>
    %111 = arith.truncf %84 : vector<8x32xf32> to vector<8x32xbf16>
    %c0_42 = arith.constant 0 : index
    %c0_43 = arith.constant 0 : index
    %112 = vector.load %arg5[%c0_42, %c0_43] : memref<32x128xbf16, #tpu.memory_space<vmem>>, vector<32x128xbf16>
    %cst_44 = arith.constant dense<0.000000e+00> : vector<8x128xf32>
    %113 = tpu.matmul %111, %112, %cst_44 {dimension_numbers = #tpu.dot_dimension_numbers<[1], [0], [0], [1], [0, 0, 1, 1], [], []>} : vector<8x32xbf16>, vector<32x128xbf16>, vector<8x128xf32> -> vector<8x128xf32>
    %114 = arith.truncf %56 : vector<8x32xf32> to vector<8x32xbf16>
    %c0_45 = arith.constant 0 : index
    %c0_46 = arith.constant 0 : index
    %115 = vector.load %arg4[%c0_45, %c0_46] : memref<32x128xbf16, #tpu.memory_space<vmem>>, vector<32x128xbf16>
    %cst_47 = arith.constant dense<0.000000e+00> : vector<8x128xf32>
    %116 = tpu.matmul %114, %115, %cst_47 {dimension_numbers = #tpu.dot_dimension_numbers<[1], [0], [0], [1], [0, 0, 1, 1], [], []>} : vector<8x32xbf16>, vector<32x128xbf16>, vector<8x128xf32> -> vector<8x128xf32>
    %117 = arith.addf %116, %113 : vector<8x128xf32>
    %c0_48 = arith.constant 0 : index
    %c0_49 = arith.constant 0 : index
    %118 = vector.load %arg6[%c0_48, %c0_49] : memref<1x128xf32, #tpu.memory_space<vmem>>, vector<1x128xf32>
    %119 = vector.broadcast %118 : vector<1x128xf32> to vector<8x128xf32>
    %120 = arith.addf %117, %119 : vector<8x128xf32>
    %121 = arith.negf %120 : vector<8x128xf32>
    %122 = math.exp %121 : vector<8x128xf32>
    %cst_50 = arith.constant 1.000000e+00 : f32
    %123 = vector.broadcast %cst_50 : f32 to vector<8x128xf32>
    %124 = arith.addf %123, %122 : vector<8x128xf32>
    %125 = arith.divf %123, %124 : vector<8x128xf32>
    %126 = vector.extract_strided_slice %125 {offsets = [0, 0], sizes = [8, 32], strides = [1, 1]} : vector<8x128xf32> to vector<8x32xf32>
    %127 = vector.extract_strided_slice %125 {offsets = [0, 32], sizes = [8, 32], strides = [1, 1]} : vector<8x128xf32> to vector<8x32xf32>
    %128 = vector.extract_strided_slice %125 {offsets = [0, 64], sizes = [8, 32], strides = [1, 1]} : vector<8x128xf32> to vector<8x32xf32>
    %cst_51 = arith.constant 2.000000e+00 : f32
    %129 = vector.broadcast %cst_51 : f32 to vector<8x32xf32>
    %130 = arith.mulf %129, %128 : vector<8x32xf32>
    %cst_52 = arith.constant 1.000000e+00 : f32
    %131 = vector.broadcast %cst_52 : f32 to vector<8x32xf32>
    %132 = arith.subf %130, %131 : vector<8x32xf32>
    %133 = vector.extract_strided_slice %125 {offsets = [0, 96], sizes = [8, 32], strides = [1, 1]} : vector<8x128xf32> to vector<8x32xf32>
    %134 = arith.mulf %127, %82 : vector<8x32xf32>
    %135 = arith.mulf %126, %132 : vector<8x32xf32>
    %136 = arith.addf %134, %135 : vector<8x32xf32>
    %137 = math.tanh %136 : vector<8x32xf32>
    %138 = arith.mulf %133, %137 : vector<8x32xf32>
    %c3_i32 = arith.constant 3 : i32
    %c8_i32_53 = arith.constant 8 : i32
    %139 = arith.muli %c3_i32, %c8_i32_53 : i32
    %140 = tpu.assume_multiple %139, 8 : i32
    %141 = arith.truncf %110 : vector<8x32xf32> to vector<8x32xbf16>
    %c0_54 = arith.constant 0 : index
    %c0_55 = arith.constant 0 : index
    %142 = vector.load %arg2[%c0_54, %c0_55] : memref<32x128xbf16, #tpu.memory_space<vmem>>, vector<32x128xbf16>
    %cst_56 = arith.constant dense<0.000000e+00> : vector<8x128xf32>
    %143 = tpu.matmul %141, %142, %cst_56 {dimension_numbers = #tpu.dot_dimension_numbers<[1], [0], [0], [1], [0, 0, 1, 1], [], []>} : vector<8x32xbf16>, vector<32x128xbf16>, vector<8x128xf32> -> vector<8x128xf32>
    %144 = arith.index_cast %140 : i32 to index
    %c0_57 = arith.constant 0 : index
    %145 = vector.load %arg10[%144, %c0_57] : memref<64x128xf32, #tpu.memory_space<vmem>>, vector<8x128xf32>
    %146 = arith.addf %145, %143 : vector<8x128xf32>
    %147 = arith.negf %146 : vector<8x128xf32>
    %148 = math.exp %147 : vector<8x128xf32>
    %cst_58 = arith.constant 1.000000e+00 : f32
    %149 = vector.broadcast %cst_58 : f32 to vector<8x128xf32>
    %150 = arith.addf %149, %148 : vector<8x128xf32>
    %151 = arith.divf %149, %150 : vector<8x128xf32>
    %152 = vector.extract_strided_slice %151 {offsets = [0, 0], sizes = [8, 32], strides = [1, 1]} : vector<8x128xf32> to vector<8x32xf32>
    %153 = vector.extract_strided_slice %151 {offsets = [0, 32], sizes = [8, 32], strides = [1, 1]} : vector<8x128xf32> to vector<8x32xf32>
    %154 = vector.extract_strided_slice %151 {offsets = [0, 64], sizes = [8, 32], strides = [1, 1]} : vector<8x128xf32> to vector<8x32xf32>
    %cst_59 = arith.constant 2.000000e+00 : f32
    %155 = vector.broadcast %cst_59 : f32 to vector<8x32xf32>
    %156 = arith.mulf %155, %154 : vector<8x32xf32>
    %cst_60 = arith.constant 1.000000e+00 : f32
    %157 = vector.broadcast %cst_60 : f32 to vector<8x32xf32>
    %158 = arith.subf %156, %157 : vector<8x32xf32>
    %159 = vector.extract_strided_slice %151 {offsets = [0, 96], sizes = [8, 32], strides = [1, 1]} : vector<8x128xf32> to vector<8x32xf32>
    %160 = arith.mulf %153, %108 : vector<8x32xf32>
    %161 = arith.mulf %152, %158 : vector<8x32xf32>
    %162 = arith.addf %160, %161 : vector<8x32xf32>
    %163 = math.tanh %162 : vector<8x32xf32>
    %164 = arith.mulf %159, %163 : vector<8x32xf32>
    %165 = arith.truncf %138 : vector<8x32xf32> to vector<8x32xbf16>
    %c0_61 = arith.constant 0 : index
    %c0_62 = arith.constant 0 : index
    %166 = vector.load %arg5[%c0_61, %c0_62] : memref<32x128xbf16, #tpu.memory_space<vmem>>, vector<32x128xbf16>
    %cst_63 = arith.constant dense<0.000000e+00> : vector<8x128xf32>
    %167 = tpu.matmul %165, %166, %cst_63 {dimension_numbers = #tpu.dot_dimension_numbers<[1], [0], [0], [1], [0, 0, 1, 1], [], []>} : vector<8x32xbf16>, vector<32x128xbf16>, vector<8x128xf32> -> vector<8x128xf32>
    %168 = arith.truncf %110 : vector<8x32xf32> to vector<8x32xbf16>
    %c0_64 = arith.constant 0 : index
    %c0_65 = arith.constant 0 : index
    %169 = vector.load %arg4[%c0_64, %c0_65] : memref<32x128xbf16, #tpu.memory_space<vmem>>, vector<32x128xbf16>
    %cst_66 = arith.constant dense<0.000000e+00> : vector<8x128xf32>
    %170 = tpu.matmul %168, %169, %cst_66 {dimension_numbers = #tpu.dot_dimension_numbers<[1], [0], [0], [1], [0, 0, 1, 1], [], []>} : vector<8x32xbf16>, vector<32x128xbf16>, vector<8x128xf32> -> vector<8x128xf32>
    %171 = arith.addf %170, %167 : vector<8x128xf32>
    %c0_67 = arith.constant 0 : index
    %c0_68 = arith.constant 0 : index
    %172 = vector.load %arg6[%c0_67, %c0_68] : memref<1x128xf32, #tpu.memory_space<vmem>>, vector<1x128xf32>
    %173 = vector.broadcast %172 : vector<1x128xf32> to vector<8x128xf32>
    %174 = arith.addf %171, %173 : vector<8x128xf32>
    %175 = arith.negf %174 : vector<8x128xf32>
    %176 = math.exp %175 : vector<8x128xf32>
    %cst_69 = arith.constant 1.000000e+00 : f32
    %177 = vector.broadcast %cst_69 : f32 to vector<8x128xf32>
    %178 = arith.addf %177, %176 : vector<8x128xf32>
    %179 = arith.divf %177, %178 : vector<8x128xf32>
    %180 = vector.extract_strided_slice %179 {offsets = [0, 0], sizes = [8, 32], strides = [1, 1]} : vector<8x128xf32> to vector<8x32xf32>
    %181 = vector.extract_strided_slice %179 {offsets = [0, 32], sizes = [8, 32], strides = [1, 1]} : vector<8x128xf32> to vector<8x32xf32>
    %182 = vector.extract_strided_slice %179 {offsets = [0, 64], sizes = [8, 32], strides = [1, 1]} : vector<8x128xf32> to vector<8x32xf32>
    %cst_70 = arith.constant 2.000000e+00 : f32
    %183 = vector.broadcast %cst_70 : f32 to vector<8x32xf32>
    %184 = arith.mulf %183, %182 : vector<8x32xf32>
    %cst_71 = arith.constant 1.000000e+00 : f32
    %185 = vector.broadcast %cst_71 : f32 to vector<8x32xf32>
    %186 = arith.subf %184, %185 : vector<8x32xf32>
    %187 = vector.extract_strided_slice %179 {offsets = [0, 96], sizes = [8, 32], strides = [1, 1]} : vector<8x128xf32> to vector<8x32xf32>
    %188 = arith.mulf %181, %136 : vector<8x32xf32>
    %189 = arith.mulf %180, %186 : vector<8x32xf32>
    %190 = arith.addf %188, %189 : vector<8x32xf32>
    %191 = math.tanh %190 : vector<8x32xf32>
    %192 = arith.mulf %187, %191 : vector<8x32xf32>
    %c4_i32 = arith.constant 4 : i32
    %c8_i32_72 = arith.constant 8 : i32
    %193 = arith.muli %c4_i32, %c8_i32_72 : i32
    %194 = tpu.assume_multiple %193, 8 : i32
    %195 = arith.truncf %164 : vector<8x32xf32> to vector<8x32xbf16>
    %c0_73 = arith.constant 0 : index
    %c0_74 = arith.constant 0 : index
    %196 = vector.load %arg2[%c0_73, %c0_74] : memref<32x128xbf16, #tpu.memory_space<vmem>>, vector<32x128xbf16>
    %cst_75 = arith.constant dense<0.000000e+00> : vector<8x128xf32>
    %197 = tpu.matmul %195, %196, %cst_75 {dimension_numbers = #tpu.dot_dimension_numbers<[1], [0], [0], [1], [0, 0, 1, 1], [], []>} : vector<8x32xbf16>, vector<32x128xbf16>, vector<8x128xf32> -> vector<8x128xf32>
    %198 = arith.index_cast %194 : i32 to index
    %c0_76 = arith.constant 0 : index
    %199 = vector.load %arg10[%198, %c0_76] : memref<64x128xf32, #tpu.memory_space<vmem>>, vector<8x128xf32>
    %200 = arith.addf %199, %197 : vector<8x128xf32>
    %201 = arith.negf %200 : vector<8x128xf32>
    %202 = math.exp %201 : vector<8x128xf32>
    %cst_77 = arith.constant 1.000000e+00 : f32
    %203 = vector.broadcast %cst_77 : f32 to vector<8x128xf32>
    %204 = arith.addf %203, %202 : vector<8x128xf32>
    %205 = arith.divf %203, %204 : vector<8x128xf32>
    %206 = vector.extract_strided_slice %205 {offsets = [0, 0], sizes = [8, 32], strides = [1, 1]} : vector<8x128xf32> to vector<8x32xf32>
    %207 = vector.extract_strided_slice %205 {offsets = [0, 32], sizes = [8, 32], strides = [1, 1]} : vector<8x128xf32> to vector<8x32xf32>
    %208 = vector.extract_strided_slice %205 {offsets = [0, 64], sizes = [8, 32], strides = [1, 1]} : vector<8x128xf32> to vector<8x32xf32>
    %cst_78 = arith.constant 2.000000e+00 : f32
    %209 = vector.broadcast %cst_78 : f32 to vector<8x32xf32>
    %210 = arith.mulf %209, %208 : vector<8x32xf32>
    %cst_79 = arith.constant 1.000000e+00 : f32
    %211 = vector.broadcast %cst_79 : f32 to vector<8x32xf32>
    %212 = arith.subf %210, %211 : vector<8x32xf32>
    %213 = vector.extract_strided_slice %205 {offsets = [0, 96], sizes = [8, 32], strides = [1, 1]} : vector<8x128xf32> to vector<8x32xf32>
    %214 = arith.mulf %207, %162 : vector<8x32xf32>
    %215 = arith.mulf %206, %212 : vector<8x32xf32>
    %216 = arith.addf %214, %215 : vector<8x32xf32>
    %217 = math.tanh %216 : vector<8x32xf32>
    %218 = arith.mulf %213, %217 : vector<8x32xf32>
    %219 = arith.truncf %192 : vector<8x32xf32> to vector<8x32xbf16>
    %c0_80 = arith.constant 0 : index
    %c0_81 = arith.constant 0 : index
    %220 = vector.load %arg5[%c0_80, %c0_81] : memref<32x128xbf16, #tpu.memory_space<vmem>>, vector<32x128xbf16>
    %cst_82 = arith.constant dense<0.000000e+00> : vector<8x128xf32>
    %221 = tpu.matmul %219, %220, %cst_82 {dimension_numbers = #tpu.dot_dimension_numbers<[1], [0], [0], [1], [0, 0, 1, 1], [], []>} : vector<8x32xbf16>, vector<32x128xbf16>, vector<8x128xf32> -> vector<8x128xf32>
    %222 = arith.truncf %164 : vector<8x32xf32> to vector<8x32xbf16>
    %c0_83 = arith.constant 0 : index
    %c0_84 = arith.constant 0 : index
    %223 = vector.load %arg4[%c0_83, %c0_84] : memref<32x128xbf16, #tpu.memory_space<vmem>>, vector<32x128xbf16>
    %cst_85 = arith.constant dense<0.000000e+00> : vector<8x128xf32>
    %224 = tpu.matmul %222, %223, %cst_85 {dimension_numbers = #tpu.dot_dimension_numbers<[1], [0], [0], [1], [0, 0, 1, 1], [], []>} : vector<8x32xbf16>, vector<32x128xbf16>, vector<8x128xf32> -> vector<8x128xf32>
    %225 = arith.addf %224, %221 : vector<8x128xf32>
    %c0_86 = arith.constant 0 : index
    %c0_87 = arith.constant 0 : index
    %226 = vector.load %arg6[%c0_86, %c0_87] : memref<1x128xf32, #tpu.memory_space<vmem>>, vector<1x128xf32>
    %227 = vector.broadcast %226 : vector<1x128xf32> to vector<8x128xf32>
    %228 = arith.addf %225, %227 : vector<8x128xf32>
    %229 = arith.negf %228 : vector<8x128xf32>
    %230 = math.exp %229 : vector<8x128xf32>
    %cst_88 = arith.constant 1.000000e+00 : f32
    %231 = vector.broadcast %cst_88 : f32 to vector<8x128xf32>
    %232 = arith.addf %231, %230 : vector<8x128xf32>
    %233 = arith.divf %231, %232 : vector<8x128xf32>
    %234 = vector.extract_strided_slice %233 {offsets = [0, 0], sizes = [8, 32], strides = [1, 1]} : vector<8x128xf32> to vector<8x32xf32>
    %235 = vector.extract_strided_slice %233 {offsets = [0, 32], sizes = [8, 32], strides = [1, 1]} : vector<8x128xf32> to vector<8x32xf32>
    %236 = vector.extract_strided_slice %233 {offsets = [0, 64], sizes = [8, 32], strides = [1, 1]} : vector<8x128xf32> to vector<8x32xf32>
    %cst_89 = arith.constant 2.000000e+00 : f32
    %237 = vector.broadcast %cst_89 : f32 to vector<8x32xf32>
    %238 = arith.mulf %237, %236 : vector<8x32xf32>
    %cst_90 = arith.constant 1.000000e+00 : f32
    %239 = vector.broadcast %cst_90 : f32 to vector<8x32xf32>
    %240 = arith.subf %238, %239 : vector<8x32xf32>
    %241 = vector.extract_strided_slice %233 {offsets = [0, 96], sizes = [8, 32], strides = [1, 1]} : vector<8x128xf32> to vector<8x32xf32>
    %242 = arith.mulf %235, %190 : vector<8x32xf32>
    %243 = arith.mulf %234, %240 : vector<8x32xf32>
    %244 = arith.addf %242, %243 : vector<8x32xf32>
    %245 = math.tanh %244 : vector<8x32xf32>
    %246 = arith.mulf %241, %245 : vector<8x32xf32>
    %c5_i32 = arith.constant 5 : i32
    %c8_i32_91 = arith.constant 8 : i32
    %247 = arith.muli %c5_i32, %c8_i32_91 : i32
    %248 = tpu.assume_multiple %247, 8 : i32
    %249 = arith.truncf %218 : vector<8x32xf32> to vector<8x32xbf16>
    %c0_92 = arith.constant 0 : index
    %c0_93 = arith.constant 0 : index
    %250 = vector.load %arg2[%c0_92, %c0_93] : memref<32x128xbf16, #tpu.memory_space<vmem>>, vector<32x128xbf16>
    %cst_94 = arith.constant dense<0.000000e+00> : vector<8x128xf32>
    %251 = tpu.matmul %249, %250, %cst_94 {dimension_numbers = #tpu.dot_dimension_numbers<[1], [0], [0], [1], [0, 0, 1, 1], [], []>} : vector<8x32xbf16>, vector<32x128xbf16>, vector<8x128xf32> -> vector<8x128xf32>
    %252 = arith.index_cast %248 : i32 to index
    %c0_95 = arith.constant 0 : index
    %253 = vector.load %arg10[%252, %c0_95] : memref<64x128xf32, #tpu.memory_space<vmem>>, vector<8x128xf32>
    %254 = arith.addf %253, %251 : vector<8x128xf32>
    %255 = arith.negf %254 : vector<8x128xf32>
    %256 = math.exp %255 : vector<8x128xf32>
    %cst_96 = arith.constant 1.000000e+00 : f32
    %257 = vector.broadcast %cst_96 : f32 to vector<8x128xf32>
    %258 = arith.addf %257, %256 : vector<8x128xf32>
    %259 = arith.divf %257, %258 : vector<8x128xf32>
    %260 = vector.extract_strided_slice %259 {offsets = [0, 0], sizes = [8, 32], strides = [1, 1]} : vector<8x128xf32> to vector<8x32xf32>
    %261 = vector.extract_strided_slice %259 {offsets = [0, 32], sizes = [8, 32], strides = [1, 1]} : vector<8x128xf32> to vector<8x32xf32>
    %262 = vector.extract_strided_slice %259 {offsets = [0, 64], sizes = [8, 32], strides = [1, 1]} : vector<8x128xf32> to vector<8x32xf32>
    %cst_97 = arith.constant 2.000000e+00 : f32
    %263 = vector.broadcast %cst_97 : f32 to vector<8x32xf32>
    %264 = arith.mulf %263, %262 : vector<8x32xf32>
    %cst_98 = arith.constant 1.000000e+00 : f32
    %265 = vector.broadcast %cst_98 : f32 to vector<8x32xf32>
    %266 = arith.subf %264, %265 : vector<8x32xf32>
    %267 = vector.extract_strided_slice %259 {offsets = [0, 96], sizes = [8, 32], strides = [1, 1]} : vector<8x128xf32> to vector<8x32xf32>
    %268 = arith.mulf %261, %216 : vector<8x32xf32>
    %269 = arith.mulf %260, %266 : vector<8x32xf32>
    %270 = arith.addf %268, %269 : vector<8x32xf32>
    %271 = math.tanh %270 : vector<8x32xf32>
    %272 = arith.mulf %267, %271 : vector<8x32xf32>
    %273 = arith.truncf %246 : vector<8x32xf32> to vector<8x32xbf16>
    %c0_99 = arith.constant 0 : index
    %c0_100 = arith.constant 0 : index
    %274 = vector.load %arg5[%c0_99, %c0_100] : memref<32x128xbf16, #tpu.memory_space<vmem>>, vector<32x128xbf16>
    %cst_101 = arith.constant dense<0.000000e+00> : vector<8x128xf32>
    %275 = tpu.matmul %273, %274, %cst_101 {dimension_numbers = #tpu.dot_dimension_numbers<[1], [0], [0], [1], [0, 0, 1, 1], [], []>} : vector<8x32xbf16>, vector<32x128xbf16>, vector<8x128xf32> -> vector<8x128xf32>
    %276 = arith.truncf %218 : vector<8x32xf32> to vector<8x32xbf16>
    %c0_102 = arith.constant 0 : index
    %c0_103 = arith.constant 0 : index
    %277 = vector.load %arg4[%c0_102, %c0_103] : memref<32x128xbf16, #tpu.memory_space<vmem>>, vector<32x128xbf16>
    %cst_104 = arith.constant dense<0.000000e+00> : vector<8x128xf32>
    %278 = tpu.matmul %276, %277, %cst_104 {dimension_numbers = #tpu.dot_dimension_numbers<[1], [0], [0], [1], [0, 0, 1, 1], [], []>} : vector<8x32xbf16>, vector<32x128xbf16>, vector<8x128xf32> -> vector<8x128xf32>
    %279 = arith.addf %278, %275 : vector<8x128xf32>
    %c0_105 = arith.constant 0 : index
    %c0_106 = arith.constant 0 : index
    %280 = vector.load %arg6[%c0_105, %c0_106] : memref<1x128xf32, #tpu.memory_space<vmem>>, vector<1x128xf32>
    %281 = vector.broadcast %280 : vector<1x128xf32> to vector<8x128xf32>
    %282 = arith.addf %279, %281 : vector<8x128xf32>
    %283 = arith.negf %282 : vector<8x128xf32>
    %284 = math.exp %283 : vector<8x128xf32>
    %cst_107 = arith.constant 1.000000e+00 : f32
    %285 = vector.broadcast %cst_107 : f32 to vector<8x128xf32>
    %286 = arith.addf %285, %284 : vector<8x128xf32>
    %287 = arith.divf %285, %286 : vector<8x128xf32>
    %288 = vector.extract_strided_slice %287 {offsets = [0, 0], sizes = [8, 32], strides = [1, 1]} : vector<8x128xf32> to vector<8x32xf32>
    %289 = vector.extract_strided_slice %287 {offsets = [0, 32], sizes = [8, 32], strides = [1, 1]} : vector<8x128xf32> to vector<8x32xf32>
    %290 = vector.extract_strided_slice %287 {offsets = [0, 64], sizes = [8, 32], strides = [1, 1]} : vector<8x128xf32> to vector<8x32xf32>
    %cst_108 = arith.constant 2.000000e+00 : f32
    %291 = vector.broadcast %cst_108 : f32 to vector<8x32xf32>
    %292 = arith.mulf %291, %290 : vector<8x32xf32>
    %cst_109 = arith.constant 1.000000e+00 : f32
    %293 = vector.broadcast %cst_109 : f32 to vector<8x32xf32>
    %294 = arith.subf %292, %293 : vector<8x32xf32>
    %295 = vector.extract_strided_slice %287 {offsets = [0, 96], sizes = [8, 32], strides = [1, 1]} : vector<8x128xf32> to vector<8x32xf32>
    %296 = arith.mulf %289, %244 : vector<8x32xf32>
    %297 = arith.mulf %288, %294 : vector<8x32xf32>
    %298 = arith.addf %296, %297 : vector<8x32xf32>
    %299 = math.tanh %298 : vector<8x32xf32>
    %300 = arith.mulf %295, %299 : vector<8x32xf32>
    %c6_i32 = arith.constant 6 : i32
    %c8_i32_110 = arith.constant 8 : i32
    %301 = arith.muli %c6_i32, %c8_i32_110 : i32
    %302 = tpu.assume_multiple %301, 8 : i32
    %303 = arith.truncf %272 : vector<8x32xf32> to vector<8x32xbf16>
    %c0_111 = arith.constant 0 : index
    %c0_112 = arith.constant 0 : index
    %304 = vector.load %arg2[%c0_111, %c0_112] : memref<32x128xbf16, #tpu.memory_space<vmem>>, vector<32x128xbf16>
    %cst_113 = arith.constant dense<0.000000e+00> : vector<8x128xf32>
    %305 = tpu.matmul %303, %304, %cst_113 {dimension_numbers = #tpu.dot_dimension_numbers<[1], [0], [0], [1], [0, 0, 1, 1], [], []>} : vector<8x32xbf16>, vector<32x128xbf16>, vector<8x128xf32> -> vector<8x128xf32>
    %306 = arith.index_cast %302 : i32 to index
    %c0_114 = arith.constant 0 : index
    %307 = vector.load %arg10[%306, %c0_114] : memref<64x128xf32, #tpu.memory_space<vmem>>, vector<8x128xf32>
    %308 = arith.addf %307, %305 : vector<8x128xf32>
    %309 = arith.negf %308 : vector<8x128xf32>
    %310 = math.exp %309 : vector<8x128xf32>
    %cst_115 = arith.constant 1.000000e+00 : f32
    %311 = vector.broadcast %cst_115 : f32 to vector<8x128xf32>
    %312 = arith.addf %311, %310 : vector<8x128xf32>
    %313 = arith.divf %311, %312 : vector<8x128xf32>
    %314 = vector.extract_strided_slice %313 {offsets = [0, 0], sizes = [8, 32], strides = [1, 1]} : vector<8x128xf32> to vector<8x32xf32>
    %315 = vector.extract_strided_slice %313 {offsets = [0, 32], sizes = [8, 32], strides = [1, 1]} : vector<8x128xf32> to vector<8x32xf32>
    %316 = vector.extract_strided_slice %313 {offsets = [0, 64], sizes = [8, 32], strides = [1, 1]} : vector<8x128xf32> to vector<8x32xf32>
    %cst_116 = arith.constant 2.000000e+00 : f32
    %317 = vector.broadcast %cst_116 : f32 to vector<8x32xf32>
    %318 = arith.mulf %317, %316 : vector<8x32xf32>
    %cst_117 = arith.constant 1.000000e+00 : f32
    %319 = vector.broadcast %cst_117 : f32 to vector<8x32xf32>
    %320 = arith.subf %318, %319 : vector<8x32xf32>
    %321 = vector.extract_strided_slice %313 {offsets = [0, 96], sizes = [8, 32], strides = [1, 1]} : vector<8x128xf32> to vector<8x32xf32>
    %322 = arith.mulf %315, %270 : vector<8x32xf32>
    %323 = arith.mulf %314, %320 : vector<8x32xf32>
    %324 = arith.addf %322, %323 : vector<8x32xf32>
    %325 = math.tanh %324 : vector<8x32xf32>
    %326 = arith.mulf %321, %325 : vector<8x32xf32>
    %327 = arith.truncf %300 : vector<8x32xf32> to vector<8x32xbf16>
    %c0_118 = arith.constant 0 : index
    %c0_119 = arith.constant 0 : index
    %328 = vector.load %arg5[%c0_118, %c0_119] : memref<32x128xbf16, #tpu.memory_space<vmem>>, vector<32x128xbf16>
    %cst_120 = arith.constant dense<0.000000e+00> : vector<8x128xf32>
    %329 = tpu.matmul %327, %328, %cst_120 {dimension_numbers = #tpu.dot_dimension_numbers<[1], [0], [0], [1], [0, 0, 1, 1], [], []>} : vector<8x32xbf16>, vector<32x128xbf16>, vector<8x128xf32> -> vector<8x128xf32>
    %330 = arith.truncf %272 : vector<8x32xf32> to vector<8x32xbf16>
    %c0_121 = arith.constant 0 : index
    %c0_122 = arith.constant 0 : index
    %331 = vector.load %arg4[%c0_121, %c0_122] : memref<32x128xbf16, #tpu.memory_space<vmem>>, vector<32x128xbf16>
    %cst_123 = arith.constant dense<0.000000e+00> : vector<8x128xf32>
    %332 = tpu.matmul %330, %331, %cst_123 {dimension_numbers = #tpu.dot_dimension_numbers<[1], [0], [0], [1], [0, 0, 1, 1], [], []>} : vector<8x32xbf16>, vector<32x128xbf16>, vector<8x128xf32> -> vector<8x128xf32>
    %333 = arith.addf %332, %329 : vector<8x128xf32>
    %c0_124 = arith.constant 0 : index
    %c0_125 = arith.constant 0 : index
    %334 = vector.load %arg6[%c0_124, %c0_125] : memref<1x128xf32, #tpu.memory_space<vmem>>, vector<1x128xf32>
    %335 = vector.broadcast %334 : vector<1x128xf32> to vector<8x128xf32>
    %336 = arith.addf %333, %335 : vector<8x128xf32>
    %337 = arith.negf %336 : vector<8x128xf32>
    %338 = math.exp %337 : vector<8x128xf32>
    %cst_126 = arith.constant 1.000000e+00 : f32
    %339 = vector.broadcast %cst_126 : f32 to vector<8x128xf32>
    %340 = arith.addf %339, %338 : vector<8x128xf32>
    %341 = arith.divf %339, %340 : vector<8x128xf32>
    %342 = vector.extract_strided_slice %341 {offsets = [0, 0], sizes = [8, 32], strides = [1, 1]} : vector<8x128xf32> to vector<8x32xf32>
    %343 = vector.extract_strided_slice %341 {offsets = [0, 32], sizes = [8, 32], strides = [1, 1]} : vector<8x128xf32> to vector<8x32xf32>
    %344 = vector.extract_strided_slice %341 {offsets = [0, 64], sizes = [8, 32], strides = [1, 1]} : vector<8x128xf32> to vector<8x32xf32>
    %cst_127 = arith.constant 2.000000e+00 : f32
    %345 = vector.broadcast %cst_127 : f32 to vector<8x32xf32>
    %346 = arith.mulf %345, %344 : vector<8x32xf32>
    %cst_128 = arith.constant 1.000000e+00 : f32
    %347 = vector.broadcast %cst_128 : f32 to vector<8x32xf32>
    %348 = arith.subf %346, %347 : vector<8x32xf32>
    %349 = vector.extract_strided_slice %341 {offsets = [0, 96], sizes = [8, 32], strides = [1, 1]} : vector<8x128xf32> to vector<8x32xf32>
    %350 = arith.mulf %343, %298 : vector<8x32xf32>
    %351 = arith.mulf %342, %348 : vector<8x32xf32>
    %352 = arith.addf %350, %351 : vector<8x32xf32>
    %353 = math.tanh %352 : vector<8x32xf32>
    %354 = arith.mulf %349, %353 : vector<8x32xf32>
    %c7_i32 = arith.constant 7 : i32
    %c8_i32_129 = arith.constant 8 : i32
    %355 = arith.muli %c7_i32, %c8_i32_129 : i32
    %356 = tpu.assume_multiple %355, 8 : i32
    %357 = arith.truncf %326 : vector<8x32xf32> to vector<8x32xbf16>
    %c0_130 = arith.constant 0 : index
    %c0_131 = arith.constant 0 : index
    %358 = vector.load %arg2[%c0_130, %c0_131] : memref<32x128xbf16, #tpu.memory_space<vmem>>, vector<32x128xbf16>
    %cst_132 = arith.constant dense<0.000000e+00> : vector<8x128xf32>
    %359 = tpu.matmul %357, %358, %cst_132 {dimension_numbers = #tpu.dot_dimension_numbers<[1], [0], [0], [1], [0, 0, 1, 1], [], []>} : vector<8x32xbf16>, vector<32x128xbf16>, vector<8x128xf32> -> vector<8x128xf32>
    %360 = arith.index_cast %356 : i32 to index
    %c0_133 = arith.constant 0 : index
    %361 = vector.load %arg10[%360, %c0_133] : memref<64x128xf32, #tpu.memory_space<vmem>>, vector<8x128xf32>
    %362 = arith.addf %361, %359 : vector<8x128xf32>
    %363 = arith.negf %362 : vector<8x128xf32>
    %364 = math.exp %363 : vector<8x128xf32>
    %cst_134 = arith.constant 1.000000e+00 : f32
    %365 = vector.broadcast %cst_134 : f32 to vector<8x128xf32>
    %366 = arith.addf %365, %364 : vector<8x128xf32>
    %367 = arith.divf %365, %366 : vector<8x128xf32>
    %368 = vector.extract_strided_slice %367 {offsets = [0, 0], sizes = [8, 32], strides = [1, 1]} : vector<8x128xf32> to vector<8x32xf32>
    %369 = vector.extract_strided_slice %367 {offsets = [0, 32], sizes = [8, 32], strides = [1, 1]} : vector<8x128xf32> to vector<8x32xf32>
    %370 = vector.extract_strided_slice %367 {offsets = [0, 64], sizes = [8, 32], strides = [1, 1]} : vector<8x128xf32> to vector<8x32xf32>
    %cst_135 = arith.constant 2.000000e+00 : f32
    %371 = vector.broadcast %cst_135 : f32 to vector<8x32xf32>
    %372 = arith.mulf %371, %370 : vector<8x32xf32>
    %cst_136 = arith.constant 1.000000e+00 : f32
    %373 = vector.broadcast %cst_136 : f32 to vector<8x32xf32>
    %374 = arith.subf %372, %373 : vector<8x32xf32>
    %375 = vector.extract_strided_slice %367 {offsets = [0, 96], sizes = [8, 32], strides = [1, 1]} : vector<8x128xf32> to vector<8x32xf32>
    %376 = arith.mulf %369, %324 : vector<8x32xf32>
    %377 = arith.mulf %368, %374 : vector<8x32xf32>
    %378 = arith.addf %376, %377 : vector<8x32xf32>
    %379 = math.tanh %378 : vector<8x32xf32>
    %380 = arith.mulf %375, %379 : vector<8x32xf32>
    %381 = arith.truncf %354 : vector<8x32xf32> to vector<8x32xbf16>
    %c0_137 = arith.constant 0 : index
    %c0_138 = arith.constant 0 : index
    %382 = vector.load %arg5[%c0_137, %c0_138] : memref<32x128xbf16, #tpu.memory_space<vmem>>, vector<32x128xbf16>
    %cst_139 = arith.constant dense<0.000000e+00> : vector<8x128xf32>
    %383 = tpu.matmul %381, %382, %cst_139 {dimension_numbers = #tpu.dot_dimension_numbers<[1], [0], [0], [1], [0, 0, 1, 1], [], []>} : vector<8x32xbf16>, vector<32x128xbf16>, vector<8x128xf32> -> vector<8x128xf32>
    %384 = arith.truncf %326 : vector<8x32xf32> to vector<8x32xbf16>
    %c0_140 = arith.constant 0 : index
    %c0_141 = arith.constant 0 : index
    %385 = vector.load %arg4[%c0_140, %c0_141] : memref<32x128xbf16, #tpu.memory_space<vmem>>, vector<32x128xbf16>
    %cst_142 = arith.constant dense<0.000000e+00> : vector<8x128xf32>
    %386 = tpu.matmul %384, %385, %cst_142 {dimension_numbers = #tpu.dot_dimension_numbers<[1], [0], [0], [1], [0, 0, 1, 1], [], []>} : vector<8x32xbf16>, vector<32x128xbf16>, vector<8x128xf32> -> vector<8x128xf32>
    %387 = arith.addf %386, %383 : vector<8x128xf32>
    %c0_143 = arith.constant 0 : index
    %c0_144 = arith.constant 0 : index
    %388 = vector.load %arg6[%c0_143, %c0_144] : memref<1x128xf32, #tpu.memory_space<vmem>>, vector<1x128xf32>
    %389 = vector.broadcast %388 : vector<1x128xf32> to vector<8x128xf32>
    %390 = arith.addf %387, %389 : vector<8x128xf32>
    %391 = arith.negf %390 : vector<8x128xf32>
    %392 = math.exp %391 : vector<8x128xf32>
    %cst_145 = arith.constant 1.000000e+00 : f32
    %393 = vector.broadcast %cst_145 : f32 to vector<8x128xf32>
    %394 = arith.addf %393, %392 : vector<8x128xf32>
    %395 = arith.divf %393, %394 : vector<8x128xf32>
    %396 = vector.extract_strided_slice %395 {offsets = [0, 0], sizes = [8, 32], strides = [1, 1]} : vector<8x128xf32> to vector<8x32xf32>
    %397 = vector.extract_strided_slice %395 {offsets = [0, 32], sizes = [8, 32], strides = [1, 1]} : vector<8x128xf32> to vector<8x32xf32>
    %398 = vector.extract_strided_slice %395 {offsets = [0, 64], sizes = [8, 32], strides = [1, 1]} : vector<8x128xf32> to vector<8x32xf32>
    %cst_146 = arith.constant 2.000000e+00 : f32
    %399 = vector.broadcast %cst_146 : f32 to vector<8x32xf32>
    %400 = arith.mulf %399, %398 : vector<8x32xf32>
    %cst_147 = arith.constant 1.000000e+00 : f32
    %401 = vector.broadcast %cst_147 : f32 to vector<8x32xf32>
    %402 = arith.subf %400, %401 : vector<8x32xf32>
    %403 = vector.extract_strided_slice %395 {offsets = [0, 96], sizes = [8, 32], strides = [1, 1]} : vector<8x128xf32> to vector<8x32xf32>
    %404 = arith.mulf %397, %352 : vector<8x32xf32>
    %405 = arith.mulf %396, %402 : vector<8x32xf32>
    %406 = arith.addf %404, %405 : vector<8x32xf32>
    %407 = math.tanh %406 : vector<8x32xf32>
    %408 = arith.mulf %403, %407 : vector<8x32xf32>
    %c7_i32_148 = arith.constant 7 : i32
    %409 = arith.truncf %408 : vector<8x32xf32> to vector<8x32xbf16>
    %c0_149 = arith.constant 0 : index
    %c0_150 = arith.constant 0 : index
    %410 = vector.load %arg5[%c0_149, %c0_150] : memref<32x128xbf16, #tpu.memory_space<vmem>>, vector<32x128xbf16>
    %cst_151 = arith.constant dense<0.000000e+00> : vector<8x128xf32>
    %411 = tpu.matmul %409, %410, %cst_151 {dimension_numbers = #tpu.dot_dimension_numbers<[1], [0], [0], [1], [0, 0, 1, 1], [], []>} : vector<8x32xbf16>, vector<32x128xbf16>, vector<8x128xf32> -> vector<8x128xf32>
    %412 = arith.truncf %380 : vector<8x32xf32> to vector<8x32xbf16>
    %c0_152 = arith.constant 0 : index
    %c0_153 = arith.constant 0 : index
    %413 = vector.load %arg4[%c0_152, %c0_153] : memref<32x128xbf16, #tpu.memory_space<vmem>>, vector<32x128xbf16>
    %cst_154 = arith.constant dense<0.000000e+00> : vector<8x128xf32>
    %414 = tpu.matmul %412, %413, %cst_154 {dimension_numbers = #tpu.dot_dimension_numbers<[1], [0], [0], [1], [0, 0, 1, 1], [], []>} : vector<8x32xbf16>, vector<32x128xbf16>, vector<8x128xf32> -> vector<8x128xf32>
    %415 = arith.addf %414, %411 : vector<8x128xf32>
    %c0_155 = arith.constant 0 : index
    %c0_156 = arith.constant 0 : index
    %416 = vector.load %arg6[%c0_155, %c0_156] : memref<1x128xf32, #tpu.memory_space<vmem>>, vector<1x128xf32>
    %417 = vector.broadcast %416 : vector<1x128xf32> to vector<8x128xf32>
    %418 = arith.addf %415, %417 : vector<8x128xf32>
    %419 = arith.negf %418 : vector<8x128xf32>
    %420 = math.exp %419 : vector<8x128xf32>
    %cst_157 = arith.constant 1.000000e+00 : f32
    %421 = vector.broadcast %cst_157 : f32 to vector<8x128xf32>
    %422 = arith.addf %421, %420 : vector<8x128xf32>
    %423 = arith.divf %421, %422 : vector<8x128xf32>
    %424 = vector.extract_strided_slice %423 {offsets = [0, 0], sizes = [8, 32], strides = [1, 1]} : vector<8x128xf32> to vector<8x32xf32>
    %425 = vector.extract_strided_slice %423 {offsets = [0, 32], sizes = [8, 32], strides = [1, 1]} : vector<8x128xf32> to vector<8x32xf32>
    %426 = vector.extract_strided_slice %423 {offsets = [0, 64], sizes = [8, 32], strides = [1, 1]} : vector<8x128xf32> to vector<8x32xf32>
    %cst_158 = arith.constant 2.000000e+00 : f32
    %427 = vector.broadcast %cst_158 : f32 to vector<8x32xf32>
    %428 = arith.mulf %427, %426 : vector<8x32xf32>
    %cst_159 = arith.constant 1.000000e+00 : f32
    %429 = vector.broadcast %cst_159 : f32 to vector<8x32xf32>
    %430 = arith.subf %428, %429 : vector<8x32xf32>
    %431 = vector.extract_strided_slice %423 {offsets = [0, 96], sizes = [8, 32], strides = [1, 1]} : vector<8x128xf32> to vector<8x32xf32>
    %432 = arith.mulf %425, %406 : vector<8x32xf32>
    %433 = arith.mulf %424, %430 : vector<8x32xf32>
    %434 = arith.addf %432, %433 : vector<8x32xf32>
    %435 = math.tanh %434 : vector<8x32xf32>
    %436 = arith.mulf %431, %435 : vector<8x32xf32>
    %437 = arith.truncf %436 : vector<8x32xf32> to vector<8x32xbf16>
    %c0_160 = arith.constant 0 : index
    %c0_161 = arith.constant 0 : index
    %438 = vector.load %arg7[%c0_160, %c0_161] : memref<32x128xbf16, #tpu.memory_space<vmem>>, vector<32x128xbf16>
    %cst_162 = arith.constant dense<0.000000e+00> : vector<8x128xf32>
    %439 = tpu.matmul %437, %438, %cst_162 {dimension_numbers = #tpu.dot_dimension_numbers<[1], [0], [0], [1], [0, 0, 1, 1], [], []>} : vector<8x32xbf16>, vector<32x128xbf16>, vector<8x128xf32> -> vector<8x128xf32>
    %c0_163 = arith.constant 0 : index
    %c0_164 = arith.constant 0 : index
    %440 = vector.load %arg8[%c0_163, %c0_164] : memref<1x128xf32, #tpu.memory_space<vmem>>, vector<1x128xf32>
    %441 = vector.broadcast %440 : vector<1x128xf32> to vector<8x128xf32>
    %442 = arith.addf %439, %441 : vector<8x128xf32>
    %c0_165 = arith.constant 0 : index
    %c0_166 = arith.constant 0 : index
    %443 = vector.load %arg9[%c0_165, %c0_166] : memref<8x128xf32, #tpu.memory_space<vmem>>, vector<8x128xf32>
    tpu.vector_store %arg9[%c0_165, %c0_166], %442 {strides = array<i32>} : memref<8x128xf32, #tpu.memory_space<vmem>>, vector<8x128xf32>,
    return
  }
}

</mosaic_0001>

<llo_original>
// kernel: tpu_custom_call.1
$region0: #{tpu_custom_call.1}
  #allocation0 [shape = 'u32[]', space=smem, size = 0x4, offset = 0x4, fixed_abs, tag = 'smem constant byte address 0x4 - core index']
  #allocation1 [shape = 'u32[144,128]{1,0:T(1,128)}', space=vmem, size = 0x12000, scoped, tag = 'internal scratch']
  #allocation2 [shape = 'f32[64,128]{1,0:T(8,128)}', space=vmem, size = 0x8000, scoped, tag = 'scratch operand']
  %s0 = inlined_call_operand.vmem [shape: bf16[64,16], index: 0, kind: input, shape index: {}]
  %s1 = inlined_call_operand.hbm [shape: bf16[16,128], index: 1, kind: input, shape index: {}]
  %s2 = inlined_call_operand.vmem [shape: bf16[32,128], index: 2, kind: input, shape index: {}]
  %s3 = inlined_call_operand.vmem [shape: f32[1,128], index: 3, kind: input, shape index: {}]
  %s4 = inlined_call_operand.vmem [shape: bf16[32,128], index: 4, kind: input, shape index: {}]
  %s5 = inlined_call_operand.vmem [shape: bf16[32,128], index: 5, kind: input, shape index: {}]
  %s6 = inlined_call_operand.vmem [shape: f32[1,128], index: 6, kind: input, shape index: {}]
  %s7 = inlined_call_operand.hbm [shape: bf16[32,128], index: 7, kind: input, shape index: {}]
  %s8 = inlined_call_operand.vmem [shape: f32[1,128], index: 8, kind: input, shape index: {}]
  %s9 = inlined_call_operand.hbm [shape: f32[8,128], index: 9, kind: output, shape index: {}]
  %s10 = sld [smem:[#allocation0]]
  $region54: #{tpu_custom_call.1} parent=0
    _
  %s12 = ssub.s32 1, %s10
  %s13 = scalar_select 0, %s12, %s10
  $region1: #{tpu_custom_call.1} parent=0
    #allocation3 [shape = 'u8[4096]{0}', space=vmem, size = 0x1000, scoped, tag = 'input window, operand 1, single buffered']
    #allocation4 [shape = 's32[1]{0}', space=sflag, size = 0x4, scoped, tag = 'scoped memory for tpu_custom_call.1']
    #allocation5 [shape = 's32[1]{0}', space=sflag, size = 0x4, scoped, tag = 'scoped memory for tpu_custom_call.1']
    #allocation6 [shape = 'u8[8192]{0}', space=vmem, size = 0x2000, scoped, tag = 'input window, operand 7, single buffered']
    #allocation7 [shape = 's32[1]{0}', space=sflag, size = 0x4, scoped, tag = 'scoped memory for tpu_custom_call.1']
    #allocation8 [shape = 'u8[4096]{0}', space=vmem, size = 0x1000, scoped, tag = 'output window, operand 0, single buffered']
    %14 = vsyncpa [#allocation4], 0
    %15 = vsyncpa [#allocation7], 0
    %16 = vsyncpa [#allocation5], 0
    // Predicated region
    $region2: #{tpu_custom_call.1} parent=1 // pred_check
      _
    $region3: #{tpu_custom_call.1} parent=1 // pred_check_branch
      %18 = sbr.rel (0) target = $region5
    $region4: #{tpu_custom_call.1} parent=1 // pred_region
      _
    $region5: #{tpu_custom_call.1} parent=1 // pred_fallthru
      _
    // Predicated region
    $region6: #{tpu_custom_call.1} parent=1 // pred_check
      _
    $region7: #{tpu_custom_call.1} parent=1 // pred_check_branch
      %20 = sbr.rel (0) target = $region9
    $region8: #{tpu_custom_call.1} parent=1 // pred_region
      %s22 = ssub.s32 128, 128
      %23 = vsyncadd [#allocation4], %s22
      %s24 = sshll.u32 [#allocation3], 4
      %s25 = int_to_ptr.vmem [resolvable:$true] %s24
      %30 = dma.hbm_to_vmem [thread:$0]  %s1, 128, %s25, [#allocation4], 64, 64, 4
    $region9: #{tpu_custom_call.1} parent=1 // pred_fallthru
      _
    // Predicated region
    $region10: #{tpu_custom_call.1} parent=1 // pred_check
      _
    $region11: #{tpu_custom_call.1} parent=1 // pred_check_branch
      %32 = sbr.rel (0) target = $region13
    $region12: #{tpu_custom_call.1} parent=1 // pred_region
      _
    $region13: #{tpu_custom_call.1} parent=1 // pred_fallthru
      _
    // Predicated region
    $region14: #{tpu_custom_call.1} parent=1 // pred_check
      _
    $region15: #{tpu_custom_call.1} parent=1 // pred_check_branch
      %34 = sbr.rel (0) target = $region17
    $region16: #{tpu_custom_call.1} parent=1 // pred_region
      _
    $region17: #{tpu_custom_call.1} parent=1 // pred_fallthru
      _
    // Predicated region
    $region18: #{tpu_custom_call.1} parent=1 // pred_check
      _
    $region19: #{tpu_custom_call.1} parent=1 // pred_check_branch
      %36 = sbr.rel (0) target = $region21
    $region20: #{tpu_custom_call.1} parent=1 // pred_region
      _
    $region21: #{tpu_custom_call.1} parent=1 // pred_fallthru
      _
    // Predicated region
    $region22: #{tpu_custom_call.1} parent=1 // pred_check
      _
    $region23: #{tpu_custom_call.1} parent=1 // pred_check_branch
      %38 = sbr.rel (0) target = $region25
    $region24: #{tpu_custom_call.1} parent=1 // pred_region
      _
    $region25: #{tpu_custom_call.1} parent=1 // pred_fallthru
      _
    // Predicated region
    $region26: #{tpu_custom_call.1} parent=1 // pred_check
      _
    $region27: #{tpu_custom_call.1} parent=1 // pred_check_branch
      %40 = sbr.rel (0) target = $region29
    $region28: #{tpu_custom_call.1} parent=1 // pred_region
      _
    $region29: #{tpu_custom_call.1} parent=1 // pred_fallthru
      _
    // Predicated region
    $region30: #{tpu_custom_call.1} parent=1 // pred_check
      _
    $region31: #{tpu_custom_call.1} parent=1 // pred_check_branch
      %42 = sbr.rel (0) target = $region33
    $region32: #{tpu_custom_call.1} parent=1 // pred_region
      %s44 = ssub.s32 256, 256
      %45 = vsyncadd [#allocation7], %s44
      %s46 = sshll.u32 [#allocation6], 4
      %s47 = int_to_ptr.vmem [resolvable:$true] %s46
      %52 = dma.hbm_to_vmem [thread:$0]  %s7, 256, %s47, [#allocation7], 64, 64, 4
    $region33: #{tpu_custom_call.1} parent=1 // pred_fallthru
      _
    // Predicated region
    $region34: #{tpu_custom_call.1} parent=1 // pred_check
      _
    $region35: #{tpu_custom_call.1} parent=1 // pred_check_branch
      %54 = sbr.rel (0) target = $region37
    $region36: #{tpu_custom_call.1} parent=1 // pred_region
      _
    $region37: #{tpu_custom_call.1} parent=1 // pred_fallthru
      _
    // Predicated region
    $region38: #{tpu_custom_call.1} parent=1 // pred_check
      _
    $region39: #{tpu_custom_call.1} parent=1 // pred_check_branch
      %56 = sbr.rel (0) target = $region41
    $region40: #{tpu_custom_call.1} parent=1 // pred_region
      %57 = dma.done [#allocation4], 128
    $region41: #{tpu_custom_call.1} parent=1 // pred_fallthru
      _
    // Predicated region
    $region42: #{tpu_custom_call.1} parent=1 // pred_check
      _
    $region43: #{tpu_custom_call.1} parent=1 // pred_check_branch
      %59 = sbr.rel (0) target = $region45
    $region44: #{tpu_custom_call.1} parent=1 // pred_region
      %60 = dma.done [#allocation7], 256
    $region45: #{tpu_custom_call.1} parent=1 // pred_fallthru
      _
    %v62 = vld [vmem:[%s0] sm:$0xf]
    %v63 = vld [vmem:[%s0 + $0x4] sm:$0xf]
    %v64 = vld [vmem:[%s0 + $0x8] sm:$0xf]
    %v65 = vld [vmem:[%s0 + $0xc] sm:$0xf]
    %v66 = vld [vmem:[%s0 + $0x10] sm:$0xf]
    %v67 = vld [vmem:[%s0 + $0x14] sm:$0xf]
    %v68 = vld [vmem:[%s0 + $0x18] sm:$0xf]
    %v69 = vld [vmem:[%s0 + $0x1c] sm:$0xf]
    %v70 = vld [vmem:[#allocation3] sm:$0xf]
    %v71 = vld [vmem:[#allocation3 + $0x4] sm:$0xf]
    %v72 = vld [vmem:[%s3] sm:$0x1]
    %v74 = vlaneseq
    %v75 = vshrl.u32 %v74, 7
    %v76 = vsub.s32 0, %v75
    %v77 = vrot.slane %v72, %v76
    %v87 = vunpack.c.l.b16 %v62
    %v88 = vunpack.c.l.b16 %v63
    %v89 = vunpack.c.l.b16 %v64
    %v90 = vunpack.c.l.b16 %v65
    %v91 = vunpack.c.l.b16 %v66
    %v92 = vunpack.c.l.b16 %v67
    %v93 = vunpack.c.l.b16 %v68
    %v94 = vunpack.c.l.b16 %v69
    %v95 = vpack.c.b16 %v88, %v87
    %v96 = vpack.c.b16 %v90, %v89
    %v97 = vpack.c.b16 %v92, %v91
    %v98 = vpack.c.b16 %v94, %v93
    %v101 = vunpack.c.l.b16 %v70
    %v102 = vunpack.c.l.b16 %v71
    %v103 = vpack.c.b16 %v102, %v101
    %vm105 = vcmask 130048
    %v107 = vsel %vm105, %v95, 0
    %v110 = vsel %vm105, %v96, 0
    %v113 = vsel %vm105, %v97, 0
    %v116 = vsel %vm105, %v98, 0
    %118 = vmatprep.subr.bf16.mxu0 0
    %119 = vmatpush1.bf16.msra.mxu0 0
    %120 = vmatprep.subr.bf16.mxu0 0
    %121 = vmatpush1.bf16.msra.mxu0 0
    %122 = vmatprep.subr.bf16.mxu0 0
    %123 = vmatpush1.bf16.msra.mxu0 0
    %124 = vmatprep.subr.bf16.mxu0 0
    %125 = vmatpush1.bf16.msra.mxu0 0
    %126 = vmatprep.subr.bf16.mxu0 0
    %127 = vmatpush1.bf16.msra.mxu0 0
    %128 = vmatprep.subr.bf16.mxu0 0
    %129 = vmatpush1.bf16.msra.mxu0 0
    %130 = vmatprep.subr.bf16.mxu0 0
    %131 = vmatpush1.bf16.msra.mxu0 0
    %132 = vmatprep.subr.bf16.mxu0 0
    %133 = vmatpush1.bf16.msra.mxu0 %v103
    %134 = vmatprep.subr.bf16.mxu0 0
    %135 = vmatpush2.bf16.msra.mxu0 0
    %136 = vmatprep.subr.bf16.mxu0 0
    %137 = vmatpush2.bf16.msra.mxu0 0
    %138 = vmatprep.subr.bf16.mxu0 0
    %139 = vmatpush2.bf16.msra.mxu0 0
    %140 = vmatprep.subr.bf16.mxu0 0
    %141 = vmatpush2.bf16.msra.mxu0 0
    %142 = vmatprep.subr.bf16.mxu0 0
    %143 = vmatpush2.bf16.msra.mxu0 0
    %144 = vmatprep.subr.bf16.mxu0 0
    %145 = vmatpush2.bf16.msra.mxu0 0
    %146 = vmatprep.subr.bf16.mxu0 0
    %147 = vmatpush2.bf16.msra.mxu0 0
    %148 = vmatprep.subr.bf16.mxu0 0
    %149 = vmatpush2.bf16.msra.mxu0 0
    %150 = vmatprep.mubr.bf16.mxu0 0
    %151 = vmatmul.mubr.bf16.gmra.mxu0 %v107
    %v152 = vpop.f32.mrf.mxu0
    %v153 = vadd.f32 %v77, %v152
    %v154 = vpop.f32.mrf.mxu0
    %v155 = vpop.f32.mrf.mxu0
    %v156 = vadd.f32 %v77, %v155
    %v157 = vpop.f32.mrf.mxu0
    %158 = vmatprep.mubr.bf16.mxu0 0
    %159 = vmatmul.mubr.bf16.gmra.mxu0 %v110
    %v160 = vpop.f32.mrf.mxu0
    %v161 = vadd.f32 %v77, %v160
    %v162 = vpop.f32.mrf.mxu0
    %v163 = vpop.f32.mrf.mxu0
    %v164 = vadd.f32 %v77, %v163
    %v165 = vpop.f32.mrf.mxu0
    %166 = vmatprep.mubr.bf16.mxu0 0
    %167 = vmatmul.mubr.bf16.gmra.mxu0 %v113
    %v168 = vpop.f32.mrf.mxu0
    %v169 = vadd.f32 %v77, %v168
    %v170 = vpop.f32.mrf.mxu0
    %v171 = vpop.f32.mrf.mxu0
    %v172 = vadd.f32 %v77, %v171
    %v173 = vpop.f32.mrf.mxu0
    %174 = vmatprep.mubr.bf16.mxu0 0
    %175 = vmatmul.mubr.bf16.gmra.mxu0 %v116
    %v176 = vpop.f32.mrf.mxu0
    %v177 = vadd.f32 %v77, %v176
    %v178 = vpop.f32.mrf.mxu0
    %v179 = vpop.f32.mrf.mxu0
    %v180 = vadd.f32 %v77, %v179
    %v181 = vpop.f32.mrf.mxu0
    %182 = vdwg.mxu0
    %183 = vst [vmem:[#allocation2] sm:$0xff] %v153
    %184 = vst [vmem:[#allocation2 + $0x8] sm:$0xff] %v156
    %185 = vst [vmem:[#allocation2 + $0x10] sm:$0xff] %v161
    %186 = vst [vmem:[#allocation2 + $0x18] sm:$0xff] %v164
    %187 = vst [vmem:[#allocation2 + $0x20] sm:$0xff] %v169
    %188 = vst [vmem:[#allocation2 + $0x28] sm:$0xff] %v172
    %189 = vst [vmem:[#allocation2 + $0x30] sm:$0xff] %v177
    %190 = vst [vmem:[#allocation2 + $0x38] sm:$0xff] %v180
    %v191 = vld [vmem:[%s2] sm:$0xf]
    %v192 = vld [vmem:[%s2 + $0x4] sm:$0xf]
    %v193 = vld [vmem:[%s2 + $0x8] sm:$0xf]
    %v194 = vld [vmem:[%s2 + $0xc] sm:$0xf]
    %v199 = vunpack.c.l.b16 %v191
    %v200 = vunpack.c.l.b16 %v192
    %v201 = vunpack.c.l.b16 %v193
    %v202 = vunpack.c.l.b16 %v194
    %v203 = vpack.c.b16 %v200, %v199
    %v204 = vpack.c.b16 %v202, %v201
    %vm207 = vcmask 261120
    %v209 = vsel %vm207, 0, 0
    %211 = vmatprep.subr.bf16.mxu0 0
    %212 = vmatpush1.bf16.msra.mxu0 0
    %213 = vmatprep.subr.bf16.mxu0 0
    %214 = vmatpush1.bf16.msra.mxu0 0
    %215 = vmatprep.subr.bf16.mxu0 0
    %216 = vmatpush1.bf16.msra.mxu0 0
    %217 = vmatprep.subr.bf16.mxu0 0
    %218 = vmatpush1.bf16.msra.mxu0 0
    %219 = vmatprep.subr.bf16.mxu0 0
    %220 = vmatpush1.bf16.msra.mxu0 0
    %221 = vmatprep.subr.bf16.mxu0 0
    %222 = vmatpush1.bf16.msra.mxu0 0
    %223 = vmatprep.subr.bf16.mxu0 0
    %224 = vmatpush1.bf16.msra.mxu0 %v204
    %225 = vmatprep.subr.bf16.mxu0 0
    %226 = vmatpush1.bf16.msra.mxu0 %v203
    %227 = vmatprep.subr.bf16.mxu0 0
    %228 = vmatpush2.bf16.msra.mxu0 0
    %229 = vmatprep.subr.bf16.mxu0 0
    %230 = vmatpush2.bf16.msra.mxu0 0
    %231 = vmatprep.subr.bf16.mxu0 0
    %232 = vmatpush2.bf16.msra.mxu0 0
    %233 = vmatprep.subr.bf16.mxu0 0
    %234 = vmatpush2.bf16.msra.mxu0 0
    %235 = vmatprep.subr.bf16.mxu0 0
    %236 = vmatpush2.bf16.msra.mxu0 0
    %237 = vmatprep.subr.bf16.mxu0 0
    %238 = vmatpush2.bf16.msra.mxu0 0
    %239 = vmatprep.subr.bf16.mxu0 0
    %240 = vmatpush2.bf16.msra.mxu0 0
    %241 = vmatprep.subr.bf16.mxu0 0
    %242 = vmatpush2.bf16.msra.mxu0 0
    %243 = vmatprep.mubr.bf16.mxu0 0
    %244 = vmatmul.mubr.bf16.gmra.mxu0 %v209
    %v245 = vpop.f32.mrf.mxu0
    %v246 = vadd.f32 0.0, %v245
    %v247 = vpop.f32.mrf.mxu0
    %v248 = vpop.f32.mrf.mxu0
    %v249 = vpop.f32.mrf.mxu0
    %250 = vdwg.mxu0
    %v251 = vld [vmem:[#allocation2] sm:$0xff]
    %v252 = vadd.f32 %v251, %v246
    %v253 = vxor.u32 %v252, 2147483648
    %v254 = vmul.f32 %v253, 1.442695
    %v255 = vpow.pop %v254
    %v256 = vadd.f32 %v255, 1.0
    %v257 = vrcp.pop %v256
    %v258 = vmul.f32 1.0, %v257
    %v259 = vmul.f32 %v258, 2.0
    %v260 = vsub.f32 %v259, 1.0
    %v261 = vmul.f32 %v258, 0.0
    %263 = vrot.lane.b32.xlu0 %v260, 64
    %v264 = vpop.permute.xlu0 %263
    %v266 = vmul.f32 %v258, %v264
    %268 = vrot.lane.b32.xlu0 %v266, 32
    %v269 = vpop.permute.xlu0 %268
    %v271 = vadd.f32 %v261, %v269
    %v272 = vtanh.pop %v271
    %274 = vrot.lane.b32.xlu0 %v272, 64
    %v275 = vpop.permute.xlu0 %274
    %v277 = vmul.f32 %v258, %v275
    %v278 = vpack.c.bf16 %v277, %v277
    %280 = vrot.lane.b32.xlu0 %v278, 32
    %v281 = vpop.permute.xlu0 %280
    %v283 = vsel %vm207, %v281, 0
    %285 = vmatprep.subr.bf16.mxu0 0
    %286 = vmatpush1.bf16.msra.mxu0 0
    %287 = vmatprep.subr.bf16.mxu0 0
    %288 = vmatpush1.bf16.msra.mxu0 0
    %289 = vmatprep.subr.bf16.mxu0 0
    %290 = vmatpush1.bf16.msra.mxu0 0
    %291 = vmatprep.subr.bf16.mxu0 0
    %292 = vmatpush1.bf16.msra.mxu0 0
    %293 = vmatprep.subr.bf16.mxu0 0
    %294 = vmatpush1.bf16.msra.mxu0 0
    %295 = vmatprep.subr.bf16.mxu0 0
    %296 = vmatpush1.bf16.msra.mxu0 0
    %297 = vmatprep.subr.bf16.mxu0 0
    %298 = vmatpush1.bf16.msra.mxu0 %v204
    %299 = vmatprep.subr.bf16.mxu0 0
    %300 = vmatpush1.bf16.msra.mxu0 %v203
    %301 = vmatprep.subr.bf16.mxu0 0
    %302 = vmatpush2.bf16.msra.mxu0 0
    %303 = vmatprep.subr.bf16.mxu0 0
    %304 = vmatpush2.bf16.msra.mxu0 0
    %305 = vmatprep.subr.bf16.mxu0 0
    %306 = vmatpush2.bf16.msra.mxu0 0
    %307 = vmatprep.subr.bf16.mxu0 0
    %308 = vmatpush2.bf16.msra.mxu0 0
    %309 = vmatprep.subr.bf16.mxu0 0
    %310 = vmatpush2.bf16.msra.mxu0 0
    %311 = vmatprep.subr.bf16.mxu0 0
    %312 = vmatpush2.bf16.msra.mxu0 0
    %313 = vmatprep.subr.bf16.mxu0 0
    %314 = vmatpush2.bf16.msra.mxu0 0
    %315 = vmatprep.subr.bf16.mxu0 0
    %316 = vmatpush2.bf16.msra.mxu0 0
    %317 = vmatprep.mubr.bf16.mxu0 0
    %318 = vmatmul.mubr.bf16.gmra.mxu0 %v283
    %v319 = vpop.f32.mrf.mxu0
    %v320 = vadd.f32 0.0, %v319
    %v321 = vpop.f32.mrf.mxu0
    %v322 = vpop.f32.mrf.mxu0
    %v323 = vpop.f32.mrf.mxu0
    %324 = vdwg.mxu0
    %s325 = scalar_lea.vmem [#allocation2], 8
    %v326 = vld [vmem:[%s325] sm:$0xff]
    %v327 = vadd.f32 %v326, %v320
    %v328 = vxor.u32 %v327, 2147483648
    %v329 = vmul.f32 %v328, 1.442695
    %v330 = vpow.pop %v329
    %v331 = vadd.f32 %v330, 1.0
    %v332 = vrcp.pop %v331
    %v333 = vmul.f32 1.0, %v332
    %v334 = vmul.f32 %v333, 2.0
    %v335 = vsub.f32 %v334, 1.0
    %v336 = vmul.f32 %v333, %v271
    %338 = vrot.lane.b32.xlu0 %v335, 64
    %v339 = vpop.permute.xlu0 %338
    %v341 = vmul.f32 %v333, %v339
    %343 = vrot.lane.b32.xlu0 %v341, 32
    %v344 = vpop.permute.xlu0 %343
    %v346 = vadd.f32 %v336, %v344
    %v347 = vtanh.pop %v346
    %349 = vrot.lane.b32.xlu0 %v347, 64
    %v350 = vpop.permute.xlu0 %349
    %v352 = vmul.f32 %v333, %v350
    %v353 = vld [vmem:[%s5] sm:$0xf]
    %v354 = vld [vmem:[%s5 + $0x4] sm:$0xf]
    %v355 = vld [vmem:[%s5 + $0x8] sm:$0xf]
    %v356 = vld [vmem:[%s5 + $0xc] sm:$0xf]
    %v361 = vunpack.c.l.b16 %v353
    %v362 = vunpack.c.l.b16 %v354
    %v363 = vunpack.c.l.b16 %v355
    %v364 = vunpack.c.l.b16 %v356
    %v365 = vpack.c.b16 %v362, %v361
    %v366 = vpack.c.b16 %v364, %v363
    %369 = vmatprep.subr.bf16.mxu0 0
    %370 = vmatpush1.bf16.msra.mxu0 0
    %371 = vmatprep.subr.bf16.mxu0 0
    %372 = vmatpush1.bf16.msra.mxu0 0
    %373 = vmatprep.subr.bf16.mxu0 0
    %374 = vmatpush1.bf16.msra.mxu0 0
    %375 = vmatprep.subr.bf16.mxu0 0
    %376 = vmatpush1.bf16.msra.mxu0 0
    %377 = vmatprep.subr.bf16.mxu0 0
    %378 = vmatpush1.bf16.msra.mxu0 0
    %379 = vmatprep.subr.bf16.mxu0 0
    %380 = vmatpush1.bf16.msra.mxu0 0
    %381 = vmatprep.subr.bf16.mxu0 0
    %382 = vmatpush1.bf16.msra.mxu0 %v366
    %383 = vmatprep.subr.bf16.mxu0 0
    %384 = vmatpush1.bf16.msra.mxu0 %v365
    %385 = vmatprep.subr.bf16.mxu0 0
    %386 = vmatpush2.bf16.msra.mxu0 0
    %387 = vmatprep.subr.bf16.mxu0 0
    %388 = vmatpush2.bf16.msra.mxu0 0
    %389 = vmatprep.subr.bf16.mxu0 0
    %390 = vmatpush2.bf16.msra.mxu0 0
    %391 = vmatprep.subr.bf16.mxu0 0
    %392 = vmatpush2.bf16.msra.mxu0 0
    %393 = vmatprep.subr.bf16.mxu0 0
    %394 = vmatpush2.bf16.msra.mxu0 0
    %395 = vmatprep.subr.bf16.mxu0 0
    %396 = vmatpush2.bf16.msra.mxu0 0
    %397 = vmatprep.subr.bf16.mxu0 0
    %398 = vmatpush2.bf16.msra.mxu0 0
    %399 = vmatprep.subr.bf16.mxu0 0
    %400 = vmatpush2.bf16.msra.mxu0 0
    %401 = vmatprep.mubr.bf16.mxu0 0
    %402 = vmatmul.mubr.bf16.gmra.mxu0 %v209
    %v403 = vpop.f32.mrf.mxu0
    %v404 = vadd.f32 0.0, %v403
    %v405 = vpop.f32.mrf.mxu0
    %v406 = vpop.f32.mrf.mxu0
    %v407 = vpop.f32.mrf.mxu0
    %408 = vdwg.mxu0
    %v409 = vld [vmem:[%s4] sm:$0xf]
    %v410 = vld [vmem:[%s4 + $0x4] sm:$0xf]
    %v411 = vld [vmem:[%s4 + $0x8] sm:$0xf]
    %v412 = vld [vmem:[%s4 + $0xc] sm:$0xf]
    %v417 = vunpack.c.l.b16 %v409
    %v418 = vunpack.c.l.b16 %v410
    %v419 = vunpack.c.l.b16 %v411
    %v420 = vunpack.c.l.b16 %v412
    %v421 = vpack.c.b16 %v418, %v417
    %v422 = vpack.c.b16 %v420, %v419
    %425 = vmatprep.subr.bf16.mxu0 0
    %426 = vmatpush1.bf16.msra.mxu0 0
    %427 = vmatprep.subr.bf16.mxu0 0
    %428 = vmatpush1.bf16.msra.mxu0 0
    %429 = vmatprep.subr.bf16.mxu0 0
    %430 = vmatpush1.bf16.msra.mxu0 0
    %431 = vmatprep.subr.bf16.mxu0 0
    %432 = vmatpush1.bf16.msra.mxu0 0
    %433 = vmatprep.subr.bf16.mxu0 0
    %434 = vmatpush1.bf16.msra.mxu0 0
    %435 = vmatprep.subr.bf16.mxu0 0
    %436 = vmatpush1.bf16.msra.mxu0 0
    %437 = vmatprep.subr.bf16.mxu0 0
    %438 = vmatpush1.bf16.msra.mxu0 %v422
    %439 = vmatprep.subr.bf16.mxu0 0
    %440 = vmatpush1.bf16.msra.mxu0 %v421
    %441 = vmatprep.subr.bf16.mxu0 0
    %442 = vmatpush2.bf16.msra.mxu0 0
    %443 = vmatprep.subr.bf16.mxu0 0
    %444 = vmatpush2.bf16.msra.mxu0 0
    %445 = vmatprep.subr.bf16.mxu0 0
    %446 = vmatpush2.bf16.msra.mxu0 0
    %447 = vmatprep.subr.bf16.mxu0 0
    %448 = vmatpush2.bf16.msra.mxu0 0
    %449 = vmatprep.subr.bf16.mxu0 0
    %450 = vmatpush2.bf16.msra.mxu0 0
    %451 = vmatprep.subr.bf16.mxu0 0
    %452 = vmatpush2.bf16.msra.mxu0 0
    %453 = vmatprep.subr.bf16.mxu0 0
    %454 = vmatpush2.bf16.msra.mxu0 0
    %455 = vmatprep.subr.bf16.mxu0 0
    %456 = vmatpush2.bf16.msra.mxu0 0
    %457 = vmatprep.mubr.bf16.mxu0 0
    %458 = vmatmul.mubr.bf16.gmra.mxu0 %v283
    %v459 = vpop.f32.mrf.mxu0
    %v460 = vadd.f32 %v404, %v459
    %v461 = vpop.f32.mrf.mxu0
    %v462 = vpop.f32.mrf.mxu0
    %v463 = vpop.f32.mrf.mxu0
    %464 = vdwg.mxu0
    %v465 = vld [vmem:[%s6] sm:$0x1]
    %v467 = vlaneseq
    %v468 = vshrl.u32 %v467, 7
    %v469 = vsub.s32 0, %v468
    %v470 = vrot.slane %v465, %v469
    %v472 = vadd.f32 %v460, %v470
    %v473 = vxor.u32 %v472, 2147483648
    %v474 = vmul.f32 %v473, 1.442695
    %v475 = vpow.pop %v474
    %v476 = vadd.f32 %v475, 1.0
    %v477 = vrcp.pop %v476
    %v478 = vmul.f32 1.0, %v477
    %v479 = vmul.f32 %v478, 2.0
    %v480 = vsub.f32 %v479, 1.0
    %v481 = vmul.f32 %v478, 0.0
    %483 = vrot.lane.b32.xlu0 %v480, 64
    %v484 = vpop.permute.xlu0 %483
    %v486 = vmul.f32 %v478, %v484
    %488 = vrot.lane.b32.xlu0 %v486, 32
    %v489 = vpop.permute.xlu0 %488
    %v491 = vadd.f32 %v481, %v489
    %v492 = vtanh.pop %v491
    %494 = vrot.lane.b32.xlu0 %v492, 64
    %v495 = vpop.permute.xlu0 %494
    %v497 = vmul.f32 %v478, %v495
    %v498 = vpack.c.bf16 %v352, %v352
    %500 = vrot.lane.b32.xlu0 %v498, 32
    %v501 = vpop.permute.xlu0 %500
    %v503 = vsel %vm207, %v501, 0
    %505 = vmatprep.subr.bf16.mxu0 0
    %506 = vmatpush1.bf16.msra.mxu0 0
    %507 = vmatprep.subr.bf16.mxu0 0
    %508 = vmatpush1.bf16.msra.mxu0 0
    %509 = vmatprep.subr.bf16.mxu0 0
    %510 = vmatpush1.bf16.msra.mxu0 0
    %511 = vmatprep.subr.bf16.mxu0 0
    %512 = vmatpush1.bf16.msra.mxu0 0
    %513 = vmatprep.subr.bf16.mxu0 0
    %514 = vmatpush1.bf16.msra.mxu0 0
    %515 = vmatprep.subr.bf16.mxu0 0
    %516 = vmatpush1.bf16.msra.mxu0 0
    %517 = vmatprep.subr.bf16.mxu0 0
    %518 = vmatpush1.bf16.msra.mxu0 %v204
    %519 = vmatprep.subr.bf16.mxu0 0
    %520 = vmatpush1.bf16.msra.mxu0 %v203
    %521 = vmatprep.subr.bf16.mxu0 0
    %522 = vmatpush2.bf16.msra.mxu0 0
    %523 = vmatprep.subr.bf16.mxu0 0
    %524 = vmatpush2.bf16.msra.mxu0 0
    %525 = vmatprep.subr.bf16.mxu0 0
    %526 = vmatpush2.bf16.msra.mxu0 0
    %527 = vmatprep.subr.bf16.mxu0 0
    %528 = vmatpush2.bf16.msra.mxu0 0
    %529 = vmatprep.subr.bf16.mxu0 0
    %530 = vmatpush2.bf16.msra.mxu0 0
    %531 = vmatprep.subr.bf16.mxu0 0
    %532 = vmatpush2.bf16.msra.mxu0 0
    %533 = vmatprep.subr.bf16.mxu0 0
    %534 = vmatpush2.bf16.msra.mxu0 0
    %535 = vmatprep.subr.bf16.mxu0 0
    %536 = vmatpush2.bf16.msra.mxu0 0
    %537 = vmatprep.mubr.bf16.mxu0 0
    %538 = vmatmul.mubr.bf16.gmra.mxu0 %v503
    %v539 = vpop.f32.mrf.mxu0
    %v540 = vadd.f32 0.0, %v539
    %v541 = vpop.f32.mrf.mxu0
    %v542 = vpop.f32.mrf.mxu0
    %v543 = vpop.f32.mrf.mxu0
    %544 = vdwg.mxu0
    %s545 = scalar_lea.vmem [#allocation2], 16
    %v546 = vld [vmem:[%s545] sm:$0xff]
    %v547 = vadd.f32 %v546, %v540
    %v548 = vxor.u32 %v547, 2147483648
    %v549 = vmul.f32 %v548, 1.442695
    %v550 = vpow.pop %v549
    %v551 = vadd.f32 %v550, 1.0
    %v552 = vrcp.pop %v551
    %v553 = vmul.f32 1.0, %v552
    %v554 = vmul.f32 %v553, 2.0
    %v555 = vsub.f32 %v554, 1.0
    %v556 = vmul.f32 %v553, %v346
    %558 = vrot.lane.b32.xlu0 %v555, 64
    %v559 = vpop.permute.xlu0 %558
    %v561 = vmul.f32 %v553, %v559
    %563 = vrot.lane.b32.xlu0 %v561, 32
    %v564 = vpop.permute.xlu0 %563
    %v566 = vadd.f32 %v556, %v564
    %v567 = vtanh.pop %v566
    %569 = vrot.lane.b32.xlu0 %v567, 64
    %v570 = vpop.permute.xlu0 %569
    %v572 = vmul.f32 %v553, %v570
    %v573 = vpack.c.bf16 %v497, %v497
    %575 = vrot.lane.b32.xlu0 %v573, 32
    %v576 = vpop.permute.xlu0 %575
    %v578 = vsel %vm207, %v576, 0
    %580 = vmatprep.subr.bf16.mxu0 0
    %581 = vmatpush1.bf16.msra.mxu0 0
    %582 = vmatprep.subr.bf16.mxu0 0
    %583 = vmatpush1.bf16.msra.mxu0 0
    %584 = vmatprep.subr.bf16.mxu0 0
    %585 = vmatpush1.bf16.msra.mxu0 0
    %586 = vmatprep.subr.bf16.mxu0 0
    %587 = vmatpush1.bf16.msra.mxu0 0
    %588 = vmatprep.subr.bf16.mxu0 0
    %589 = vmatpush1.bf16.msra.mxu0 0
    %590 = vmatprep.subr.bf16.mxu0 0
    %591 = vmatpush1.bf16.msra.mxu0 0
    %592 = vmatprep.subr.bf16.mxu0 0
    %593 = vmatpush1.bf16.msra.mxu0 %v366
    %594 = vmatprep.subr.bf16.mxu0 0
    %595 = vmatpush1.bf16.msra.mxu0 %v365
    %596 = vmatprep.subr.bf16.mxu0 0
    %597 = vmatpush2.bf16.msra.mxu0 0
    %598 = vmatprep.subr.bf16.mxu0 0
    %599 = vmatpush2.bf16.msra.mxu0 0
    %600 = vmatprep.subr.bf16.mxu0 0
    %601 = vmatpush2.bf16.msra.mxu0 0
    %602 = vmatprep.subr.bf16.mxu0 0
    %603 = vmatpush2.bf16.msra.mxu0 0
    %604 = vmatprep.subr.bf16.mxu0 0
    %605 = vmatpush2.bf16.msra.mxu0 0
    %606 = vmatprep.subr.bf16.mxu0 0
    %607 = vmatpush2.bf16.msra.mxu0 0
    %608 = vmatprep.subr.bf16.mxu0 0
    %609 = vmatpush2.bf16.msra.mxu0 0
    %610 = vmatprep.subr.bf16.mxu0 0
    %611 = vmatpush2.bf16.msra.mxu0 0
    %612 = vmatprep.mubr.bf16.mxu0 0
    %613 = vmatmul.mubr.bf16.gmra.mxu0 %v578
    %v614 = vpop.f32.mrf.mxu0
    %v615 = vadd.f32 0.0, %v614
    %v616 = vpop.f32.mrf.mxu0
    %v617 = vpop.f32.mrf.mxu0
    %v618 = vpop.f32.mrf.mxu0
    %619 = vdwg.mxu0
    %620 = vmatprep.subr.bf16.mxu0 0
    %621 = vmatpush1.bf16.msra.mxu0 0
    %622 = vmatprep.subr.bf16.mxu0 0
    %623 = vmatpush1.bf16.msra.mxu0 0
    %624 = vmatprep.subr.bf16.mxu0 0
    %625 = vmatpush1.bf16.msra.mxu0 0
    %626 = vmatprep.subr.bf16.mxu0 0
    %627 = vmatpush1.bf16.msra.mxu0 0
    %628 = vmatprep.subr.bf16.mxu0 0
    %629 = vmatpush1.bf16.msra.mxu0 0
    %630 = vmatprep.subr.bf16.mxu0 0
    %631 = vmatpush1.bf16.msra.mxu0 0
    %632 = vmatprep.subr.bf16.mxu0 0
    %633 = vmatpush1.bf16.msra.mxu0 %v422
    %634 = vmatprep.subr.bf16.mxu0 0
    %635 = vmatpush1.bf16.msra.mxu0 %v421
    %636 = vmatprep.subr.bf16.mxu0 0
    %637 = vmatpush2.bf16.msra.mxu0 0
    %638 = vmatprep.subr.bf16.mxu0 0
    %639 = vmatpush2.bf16.msra.mxu0 0
    %640 = vmatprep.subr.bf16.mxu0 0
    %641 = vmatpush2.bf16.msra.mxu0 0
    %642 = vmatprep.subr.bf16.mxu0 0
    %643 = vmatpush2.bf16.msra.mxu0 0
    %644 = vmatprep.subr.bf16.mxu0 0
    %645 = vmatpush2.bf16.msra.mxu0 0
    %646 = vmatprep.subr.bf16.mxu0 0
    %647 = vmatpush2.bf16.msra.mxu0 0
    %648 = vmatprep.subr.bf16.mxu0 0
    %649 = vmatpush2.bf16.msra.mxu0 0
    %650 = vmatprep.subr.bf16.mxu0 0
    %651 = vmatpush2.bf16.msra.mxu0 0
    %652 = vmatprep.mubr.bf16.mxu0 0
    %653 = vmatmul.mubr.bf16.gmra.mxu0 %v503
    %v654 = vpop.f32.mrf.mxu0
    %v655 = vadd.f32 %v615, %v654
    %v656 = vpop.f32.mrf.mxu0
    %v657 = vpop.f32.mrf.mxu0
    %v658 = vpop.f32.mrf.mxu0
    %659 = vdwg.mxu0
    %v660 = vadd.f32 %v655, %v470
    %v661 = vxor.u32 %v660, 2147483648
    %v662 = vmul.f32 %v661, 1.442695
    %v663 = vpow.pop %v662
    %v664 = vadd.f32 %v663, 1.0
    %v665 = vrcp.pop %v664
    %v666 = vmul.f32 1.0, %v665
    %v667 = vmul.f32 %v666, 2.0
    %v668 = vsub.f32 %v667, 1.0
    %v669 = vmul.f32 %v666, %v491
    %671 = vrot.lane.b32.xlu0 %v668, 64
    %v672 = vpop.permute.xlu0 %671
    %v674 = vmul.f32 %v666, %v672
    %676 = vrot.lane.b32.xlu0 %v674, 32
    %v677 = vpop.permute.xlu0 %676
    %v679 = vadd.f32 %v669, %v677
    %v680 = vtanh.pop %v679
    %682 = vrot.lane.b32.xlu0 %v680, 64
    %v683 = vpop.permute.xlu0 %682
    %v685 = vmul.f32 %v666, %v683
    %v686 = vpack.c.bf16 %v572, %v572
    %688 = vrot.lane.b32.xlu0 %v686, 32
    %v689 = vpop.permute.xlu0 %688
    %v691 = vsel %vm207, %v689, 0
    %693 = vmatprep.subr.bf16.mxu0 0
    %694 = vmatpush1.bf16.msra.mxu0 0
    %695 = vmatprep.subr.bf16.mxu0 0
    %696 = vmatpush1.bf16.msra.mxu0 0
    %697 = vmatprep.subr.bf16.mxu0 0
    %698 = vmatpush1.bf16.msra.mxu0 0
    %699 = vmatprep.subr.bf16.mxu0 0
    %700 = vmatpush1.bf16.msra.mxu0 0
    %701 = vmatprep.subr.bf16.mxu0 0
    %702 = vmatpush1.bf16.msra.mxu0 0
    %703 = vmatprep.subr.bf16.mxu0 0
    %704 = vmatpush1.bf16.msra.mxu0 0
    %705 = vmatprep.subr.bf16.mxu0 0
    %706 = vmatpush1.bf16.msra.mxu0 %v204
    %707 = vmatprep.subr.bf16.mxu0 0
    %708 = vmatpush1.bf16.msra.mxu0 %v203
    %709 = vmatprep.subr.bf16.mxu0 0
    %710 = vmatpush2.bf16.msra.mxu0 0
    %711 = vmatprep.subr.bf16.mxu0 0
    %712 = vmatpush2.bf16.msra.mxu0 0
    %713 = vmatprep.subr.bf16.mxu0 0
    %714 = vmatpush2.bf16.msra.mxu0 0
    %715 = vmatprep.subr.bf16.mxu0 0
    %716 = vmatpush2.bf16.msra.mxu0 0
    %717 = vmatprep.subr.bf16.mxu0 0
    %718 = vmatpush2.bf16.msra.mxu0 0
    %719 = vmatprep.subr.bf16.mxu0 0
    %720 = vmatpush2.bf16.msra.mxu0 0
    %721 = vmatprep.subr.bf16.mxu0 0
    %722 = vmatpush2.bf16.msra.mxu0 0
    %723 = vmatprep.subr.bf16.mxu0 0
    %724 = vmatpush2.bf16.msra.mxu0 0
    %725 = vmatprep.mubr.bf16.mxu0 0
    %726 = vmatmul.mubr.bf16.gmra.mxu0 %v691
    %v727 = vpop.f32.mrf.mxu0
    %v728 = vadd.f32 0.0, %v727
    %v729 = vpop.f32.mrf.mxu0
    %v730 = vpop.f32.mrf.mxu0
    %v731 = vpop.f32.mrf.mxu0
    %732 = vdwg.mxu0
    %s733 = scalar_lea.vmem [#allocation2], 24
    %v734 = vld [vmem:[%s733] sm:$0xff]
    %v735 = vadd.f32 %v734, %v728
    %v736 = vxor.u32 %v735, 2147483648
    %v737 = vmul.f32 %v736, 1.442695
    %v738 = vpow.pop %v737
    %v739 = vadd.f32 %v738, 1.0
    %v740 = vrcp.pop %v739
    %v741 = vmul.f32 1.0, %v740
    %v742 = vmul.f32 %v741, 2.0
    %v743 = vsub.f32 %v742, 1.0
    %v744 = vmul.f32 %v741, %v566
    %746 = vrot.lane.b32.xlu0 %v743, 64
    %v747 = vpop.permute.xlu0 %746
    %v749 = vmul.f32 %v741, %v747
    %751 = vrot.lane.b32.xlu0 %v749, 32
    %v752 = vpop.permute.xlu0 %751
    %v754 = vadd.f32 %v744, %v752
    %v755 = vtanh.pop %v754
    %757 = vrot.lane.b32.xlu0 %v755, 64
    %v758 = vpop.permute.xlu0 %757
    %v760 = vmul.f32 %v741, %v758
    %v761 = vpack.c.bf16 %v685, %v685
    %763 = vrot.lane.b32.xlu0 %v761, 32
    %v764 = vpop.permute.xlu0 %763
    %v766 = vsel %vm207, %v764, 0
    %768 = vmatprep.subr.bf16.mxu0 0
    %769 = vmatpush1.bf16.msra.mxu0 0
    %770 = vmatprep.subr.bf16.mxu0 0
    %771 = vmatpush1.bf16.msra.mxu0 0
    %772 = vmatprep.subr.bf16.mxu0 0
    %773 = vmatpush1.bf16.msra.mxu0 0
    %774 = vmatprep.subr.bf16.mxu0 0
    %775 = vmatpush1.bf16.msra.mxu0 0
    %776 = vmatprep.subr.bf16.mxu0 0
    %777 = vmatpush1.bf16.msra.mxu0 0
    %778 = vmatprep.subr.bf16.mxu0 0
    %779 = vmatpush1.bf16.msra.mxu0 0
    %780 = vmatprep.subr.bf16.mxu0 0
    %781 = vmatpush1.bf16.msra.mxu0 %v366
    %782 = vmatprep.subr.bf16.mxu0 0
    %783 = vmatpush1.bf16.msra.mxu0 %v365
    %784 = vmatprep.subr.bf16.mxu0 0
    %785 = vmatpush2.bf16.msra.mxu0 0
    %786 = vmatprep.subr.bf16.mxu0 0
    %787 = vmatpush2.bf16.msra.mxu0 0
    %788 = vmatprep.subr.bf16.mxu0 0
    %789 = vmatpush2.bf16.msra.mxu0 0
    %790 = vmatprep.subr.bf16.mxu0 0
    %791 = vmatpush2.bf16.msra.mxu0 0
    %792 = vmatprep.subr.bf16.mxu0 0
    %793 = vmatpush2.bf16.msra.mxu0 0
    %794 = vmatprep.subr.bf16.mxu0 0
    %795 = vmatpush2.bf16.msra.mxu0 0
    %796 = vmatprep.subr.bf16.mxu0 0
    %797 = vmatpush2.bf16.msra.mxu0 0
    %798 = vmatprep.subr.bf16.mxu0 0
    %799 = vmatpush2.bf16.msra.mxu0 0
    %800 = vmatprep.mubr.bf16.mxu0 0
    %801 = vmatmul.mubr.bf16.gmra.mxu0 %v766
    %v802 = vpop.f32.mrf.mxu0
    %v803 = vadd.f32 0.0, %v802
    %v804 = vpop.f32.mrf.mxu0
    %v805 = vpop.f32.mrf.mxu0
    %v806 = vpop.f32.mrf.mxu0
    %807 = vdwg.mxu0
    %808 = vmatprep.subr.bf16.mxu0 0
    %809 = vmatpush1.bf16.msra.mxu0 0
    %810 = vmatprep.subr.bf16.mxu0 0
    %811 = vmatpush1.bf16.msra.mxu0 0
    %812 = vmatprep.subr.bf16.mxu0 0
    %813 = vmatpush1.bf16.msra.mxu0 0
    %814 = vmatprep.subr.bf16.mxu0 0
    %815 = vmatpush1.bf16.msra.mxu0 0
    %816 = vmatprep.subr.bf16.mxu0 0
    %817 = vmatpush1.bf16.msra.mxu0 0
    %818 = vmatprep.subr.bf16.mxu0 0
    %819 = vmatpush1.bf16.msra.mxu0 0
    %820 = vmatprep.subr.bf16.mxu0 0
    %821 = vmatpush1.bf16.msra.mxu0 %v422
    %822 = vmatprep.subr.bf16.mxu0 0
    %823 = vmatpush1.bf16.msra.mxu0 %v421
    %824 = vmatprep.subr.bf16.mxu0 0
    %825 = vmatpush2.bf16.msra.mxu0 0
    %826 = vmatprep.subr.bf16.mxu0 0
    %827 = vmatpush2.bf16.msra.mxu0 0
    %828 = vmatprep.subr.bf16.mxu0 0
    %829 = vmatpush2.bf16.msra.mxu0 0
    %830 = vmatprep.subr.bf16.mxu0 0
    %831 = vmatpush2.bf16.msra.mxu0 0
    %832 = vmatprep.subr.bf16.mxu0 0
    %833 = vmatpush2.bf16.msra.mxu0 0
    %834 = vmatprep.subr.bf16.mxu0 0
    %835 = vmatpush2.bf16.msra.mxu0 0
    %836 = vmatprep.subr.bf16.mxu0 0
    %837 = vmatpush2.bf16.msra.mxu0 0
    %838 = vmatprep.subr.bf16.mxu0 0
    %839 = vmatpush2.bf16.msra.mxu0 0
    %840 = vmatprep.mubr.bf16.mxu0 0
    %841 = vmatmul.mubr.bf16.gmra.mxu0 %v691
    %v842 = vpop.f32.mrf.mxu0
    %v843 = vadd.f32 %v803, %v842
    %v844 = vpop.f32.mrf.mxu0
    %v845 = vpop.f32.mrf.mxu0
    %v846 = vpop.f32.mrf.mxu0
    %847 = vdwg.mxu0
    %v848 = vadd.f32 %v843, %v470
    %v849 = vxor.u32 %v848, 2147483648
    %v850 = vmul.f32 %v849, 1.442695
    %v851 = vpow.pop %v850
    %v852 = vadd.f32 %v851, 1.0
    %v853 = vrcp.pop %v852
    %v854 = vmul.f32 1.0, %v853
    %v855 = vmul.f32 %v854, 2.0
    %v856 = vsub.f32 %v855, 1.0
    %v857 = vmul.f32 %v854, %v679
    %859 = vrot.lane.b32.xlu0 %v856, 64
    %v860 = vpop.permute.xlu0 %859
    %v862 = vmul.f32 %v854, %v860
    %864 = vrot.lane.b32.xlu0 %v862, 32
    %v865 = vpop.permute.xlu0 %864
    %v867 = vadd.f32 %v857, %v865
    %v868 = vtanh.pop %v867
    %870 = vrot.lane.b32.xlu0 %v868, 64
    %v871 = vpop.permute.xlu0 %870
    %v873 = vmul.f32 %v854, %v871
    %v874 = vpack.c.bf16 %v760, %v760
    %876 = vrot.lane.b32.xlu0 %v874, 32
    %v877 = vpop.permute.xlu0 %876
    %v879 = vsel %vm207, %v877, 0
    %881 = vmatprep.subr.bf16.mxu0 0
    %882 = vmatpush1.bf16.msra.mxu0 0
    %883 = vmatprep.subr.bf16.mxu0 0
    %884 = vmatpush1.bf16.msra.mxu0 0
    %885 = vmatprep.subr.bf16.mxu0 0
    %886 = vmatpush1.bf16.msra.mxu0 0
    %887 = vmatprep.subr.bf16.mxu0 0
    %888 = vmatpush1.bf16.msra.mxu0 0
    %889 = vmatprep.subr.bf16.mxu0 0
    %890 = vmatpush1.bf16.msra.mxu0 0
    %891 = vmatprep.subr.bf16.mxu0 0
    %892 = vmatpush1.bf16.msra.mxu0 0
    %893 = vmatprep.subr.bf16.mxu0 0
    %894 = vmatpush1.bf16.msra.mxu0 %v204
    %895 = vmatprep.subr.bf16.mxu0 0
    %896 = vmatpush1.bf16.msra.mxu0 %v203
    %897 = vmatprep.subr.bf16.mxu0 0
    %898 = vmatpush2.bf16.msra.mxu0 0
    %899 = vmatprep.subr.bf16.mxu0 0
    %900 = vmatpush2.bf16.msra.mxu0 0
    %901 = vmatprep.subr.bf16.mxu0 0
    %902 = vmatpush2.bf16.msra.mxu0 0
    %903 = vmatprep.subr.bf16.mxu0 0
    %904 = vmatpush2.bf16.msra.mxu0 0
    %905 = vmatprep.subr.bf16.mxu0 0
    %906 = vmatpush2.bf16.msra.mxu0 0
    %907 = vmatprep.subr.bf16.mxu0 0
    %908 = vmatpush2.bf16.msra.mxu0 0
    %909 = vmatprep.subr.bf16.mxu0 0
    %910 = vmatpush2.bf16.msra.mxu0 0
    %911 = vmatprep.subr.bf16.mxu0 0
    %912 = vmatpush2.bf16.msra.mxu0 0
    %913 = vmatprep.mubr.bf16.mxu0 0
    %914 = vmatmul.mubr.bf16.gmra.mxu0 %v879
    %v915 = vpop.f32.mrf.mxu0
    %v916 = vadd.f32 0.0, %v915
    %v917 = vpop.f32.mrf.mxu0
    %v918 = vpop.f32.mrf.mxu0
    %v919 = vpop.f32.mrf.mxu0
    %920 = vdwg.mxu0
    %s921 = scalar_lea.vmem [#allocation2], 32
    %v922 = vld [vmem:[%s921] sm:$0xff]
    %v923 = vadd.f32 %v922, %v916
    %v924 = vxor.u32 %v923, 2147483648
    %v925 = vmul.f32 %v924, 1.442695
    %v926 = vpow.pop %v925
    %v927 = vadd.f32 %v926, 1.0
    %v928 = vrcp.pop %v927
    %v929 = vmul.f32 1.0, %v928
    %v930 = vmul.f32 %v929, 2.0
    %v931 = vsub.f32 %v930, 1.0
    %v932 = vmul.f32 %v929, %v754
    %934 = vrot.lane.b32.xlu0 %v931, 64
    %v935 = vpop.permute.xlu0 %934
    %v937 = vmul.f32 %v929, %v935
    %939 = vrot.lane.b32.xlu0 %v937, 32
    %v940 = vpop.permute.xlu0 %939
    %v942 = vadd.f32 %v932, %v940
    %v943 = vtanh.pop %v942
    %945 = vrot.lane.b32.xlu0 %v943, 64
    %v946 = vpop.permute.xlu0 %945
    %v948 = vmul.f32 %v929, %v946
    %v949 = vpack.c.bf16 %v873, %v873
    %951 = vrot.lane.b32.xlu0 %v949, 32
    %v952 = vpop.permute.xlu0 %951
    %v954 = vsel %vm207, %v952, 0
    %956 = vmatprep.subr.bf16.mxu0 0
    %957 = vmatpush1.bf16.msra.mxu0 0
    %958 = vmatprep.subr.bf16.mxu0 0
    %959 = vmatpush1.bf16.msra.mxu0 0
    %960 = vmatprep.subr.bf16.mxu0 0
    %961 = vmatpush1.bf16.msra.mxu0 0
    %962 = vmatprep.subr.bf16.mxu0 0
    %963 = vmatpush1.bf16.msra.mxu0 0
    %964 = vmatprep.subr.bf16.mxu0 0
    %965 = vmatpush1.bf16.msra.mxu0 0
    %966 = vmatprep.subr.bf16.mxu0 0
    %967 = vmatpush1.bf16.msra.mxu0 0
    %968 = vmatprep.subr.bf16.mxu0 0
    %969 = vmatpush1.bf16.msra.mxu0 %v366
    %970 = vmatprep.subr.bf16.mxu0 0
    %971 = vmatpush1.bf16.msra.mxu0 %v365
    %972 = vmatprep.subr.bf16.mxu0 0
    %973 = vmatpush2.bf16.msra.mxu0 0
    %974 = vmatprep.subr.bf16.mxu0 0
    %975 = vmatpush2.bf16.msra.mxu0 0
    %976 = vmatprep.subr.bf16.mxu0 0
    %977 = vmatpush2.bf16.msra.mxu0 0
    %978 = vmatprep.subr.bf16.mxu0 0
    %979 = vmatpush2.bf16.msra.mxu0 0
    %980 = vmatprep.subr.bf16.mxu0 0
    %981 = vmatpush2.bf16.msra.mxu0 0
    %982 = vmatprep.subr.bf16.mxu0 0
    %983 = vmatpush2.bf16.msra.mxu0 0
    %984 = vmatprep.subr.bf16.mxu0 0
    %985 = vmatpush2.bf16.msra.mxu0 0
    %986 = vmatprep.subr.bf16.mxu0 0
    %987 = vmatpush2.bf16.msra.mxu0 0
    %988 = vmatprep.mubr.bf16.mxu0 0
    %989 = vmatmul.mubr.bf16.gmra.mxu0 %v954
    %v990 = vpop.f32.mrf.mxu0
    %v991 = vadd.f32 0.0, %v990
    %v992 = vpop.f32.mrf.mxu0
    %v993 = vpop.f32.mrf.mxu0
    %v994 = vpop.f32.mrf.mxu0
    %995 = vdwg.mxu0
    %996 = vmatprep.subr.bf16.mxu0 0
    %997 = vmatpush1.bf16.msra.mxu0 0
    %998 = vmatprep.subr.bf16.mxu0 0
    %999 = vmatpush1.bf16.msra.mxu0 0
    %1000 = vmatprep.subr.bf16.mxu0 0
    %1001 = vmatpush1.bf16.msra.mxu0 0
    %1002 = vmatprep.subr.bf16.mxu0 0
    %1003 = vmatpush1.bf16.msra.mxu0 0
    %1004 = vmatprep.subr.bf16.mxu0 0
    %1005 = vmatpush1.bf16.msra.mxu0 0
    %1006 = vmatprep.subr.bf16.mxu0 0
    %1007 = vmatpush1.bf16.msra.mxu0 0
    %1008 = vmatprep.subr.bf16.mxu0 0
    %1009 = vmatpush1.bf16.msra.mxu0 %v422
    %1010 = vmatprep.subr.bf16.mxu0 0
    %1011 = vmatpush1.bf16.msra.mxu0 %v421
    %1012 = vmatprep.subr.bf16.mxu0 0
    %1013 = vmatpush2.bf16.msra.mxu0 0
    %1014 = vmatprep.subr.bf16.mxu0 0
    %1015 = vmatpush2.bf16.msra.mxu0 0
    %1016 = vmatprep.subr.bf16.mxu0 0
    %1017 = vmatpush2.bf16.msra.mxu0 0
    %1018 = vmatprep.subr.bf16.mxu0 0
    %1019 = vmatpush2.bf16.msra.mxu0 0
    %1020 = vmatprep.subr.bf16.mxu0 0
    %1021 = vmatpush2.bf16.msra.mxu0 0
    %1022 = vmatprep.subr.bf16.mxu0 0
    %1023 = vmatpush2.bf16.msra.mxu0 0
    %1024 = vmatprep.subr.bf16.mxu0 0
    %1025 = vmatpush2.bf16.msra.mxu0 0
    %1026 = vmatprep.subr.bf16.mxu0 0
    %1027 = vmatpush2.bf16.msra.mxu0 0
    %1028 = vmatprep.mubr.bf16.mxu0 0
    %1029 = vmatmul.mubr.bf16.gmra.mxu0 %v879
    %v1030 = vpop.f32.mrf.mxu0
    %v1031 = vadd.f32 %v991, %v1030
    %v1032 = vpop.f32.mrf.mxu0
    %v1033 = vpop.f32.mrf.mxu0
    %v1034 = vpop.f32.mrf.mxu0
    %1035 = vdwg.mxu0
    %v1036 = vadd.f32 %v1031, %v470
    %v1037 = vxor.u32 %v1036, 2147483648
    %v1038 = vmul.f32 %v1037, 1.442695
    %v1039 = vpow.pop %v1038
    %v1040 = vadd.f32 %v1039, 1.0
    %v1041 = vrcp.pop %v1040
    %v1042 = vmul.f32 1.0, %v1041
    %v1043 = vmul.f32 %v1042, 2.0
    %v1044 = vsub.f32 %v1043, 1.0
    %v1045 = vmul.f32 %v1042, %v867
    %1047 = vrot.lane.b32.xlu0 %v1044, 64
    %v1048 = vpop.permute.xlu0 %1047
    %v1050 = vmul.f32 %v1042, %v1048
    %1052 = vrot.lane.b32.xlu0 %v1050, 32
    %v1053 = vpop.permute.xlu0 %1052
    %v1055 = vadd.f32 %v1045, %v1053
    %v1056 = vtanh.pop %v1055
    %1058 = vrot.lane.b32.xlu0 %v1056, 64
    %v1059 = vpop.permute.xlu0 %1058
    %v1061 = vmul.f32 %v1042, %v1059
    %v1062 = vpack.c.bf16 %v948, %v948
    %1064 = vrot.lane.b32.xlu0 %v1062, 32
    %v1065 = vpop.permute.xlu0 %1064
    %v1067 = vsel %vm207, %v1065, 0
    %1069 = vmatprep.subr.bf16.mxu0 0
    %1070 = vmatpush1.bf16.msra.mxu0 0
    %1071 = vmatprep.subr.bf16.mxu0 0
    %1072 = vmatpush1.bf16.msra.mxu0 0
    %1073 = vmatprep.subr.bf16.mxu0 0
    %1074 = vmatpush1.bf16.msra.mxu0 0
    %1075 = vmatprep.subr.bf16.mxu0 0
    %1076 = vmatpush1.bf16.msra.mxu0 0
    %1077 = vmatprep.subr.bf16.mxu0 0
    %1078 = vmatpush1.bf16.msra.mxu0 0
    %1079 = vmatprep.subr.bf16.mxu0 0
    %1080 = vmatpush1.bf16.msra.mxu0 0
    %1081 = vmatprep.subr.bf16.mxu0 0
    %1082 = vmatpush1.bf16.msra.mxu0 %v204
    %1083 = vmatprep.subr.bf16.mxu0 0
    %1084 = vmatpush1.bf16.msra.mxu0 %v203
    %1085 = vmatprep.subr.bf16.mxu0 0
    %1086 = vmatpush2.bf16.msra.mxu0 0
    %1087 = vmatprep.subr.bf16.mxu0 0
    %1088 = vmatpush2.bf16.msra.mxu0 0
    %1089 = vmatprep.subr.bf16.mxu0 0
    %1090 = vmatpush2.bf16.msra.mxu0 0
    %1091 = vmatprep.subr.bf16.mxu0 0
    %1092 = vmatpush2.bf16.msra.mxu0 0
    %1093 = vmatprep.subr.bf16.mxu0 0
    %1094 = vmatpush2.bf16.msra.mxu0 0
    %1095 = vmatprep.subr.bf16.mxu0 0
    %1096 = vmatpush2.bf16.msra.mxu0 0
    %1097 = vmatprep.subr.bf16.mxu0 0
    %1098 = vmatpush2.bf16.msra.mxu0 0
    %1099 = vmatprep.subr.bf16.mxu0 0
    %1100 = vmatpush2.bf16.msra.mxu0 0
    %1101 = vmatprep.mubr.bf16.mxu0 0
    %1102 = vmatmul.mubr.bf16.gmra.mxu0 %v1067
    %v1103 = vpop.f32.mrf.mxu0
    %v1104 = vadd.f32 0.0, %v1103
    %v1105 = vpop.f32.mrf.mxu0
    %v1106 = vpop.f32.mrf.mxu0
    %v1107 = vpop.f32.mrf.mxu0
    %1108 = vdwg.mxu0
    %s1109 = scalar_lea.vmem [#allocation2], 40
    %v1110 = vld [vmem:[%s1109] sm:$0xff]
    %v1111 = vadd.f32 %v1110, %v1104
    %v1112 = vxor.u32 %v1111, 2147483648
    %v1113 = vmul.f32 %v1112, 1.442695
    %v1114 = vpow.pop %v1113
    %v1115 = vadd.f32 %v1114, 1.0
    %v1116 = vrcp.pop %v1115
    %v1117 = vmul.f32 1.0, %v1116
    %v1118 = vmul.f32 %v1117, 2.0
    %v1119 = vsub.f32 %v1118, 1.0
    %v1120 = vmul.f32 %v1117, %v942
    %1122 = vrot.lane.b32.xlu0 %v1119, 64
    %v1123 = vpop.permute.xlu0 %1122
    %v1125 = vmul.f32 %v1117, %v1123
    %1127 = vrot.lane.b32.xlu0 %v1125, 32
    %v1128 = vpop.permute.xlu0 %1127
    %v1130 = vadd.f32 %v1120, %v1128
    %v1131 = vtanh.pop %v1130
    %1133 = vrot.lane.b32.xlu0 %v1131, 64
    %v1134 = vpop.permute.xlu0 %1133
    %v1136 = vmul.f32 %v1117, %v1134
    %v1137 = vpack.c.bf16 %v1061, %v1061
    %1139 = vrot.lane.b32.xlu0 %v1137, 32
    %v1140 = vpop.permute.xlu0 %1139
    %v1142 = vsel %vm207, %v1140, 0
    %1144 = vmatprep.subr.bf16.mxu0 0
    %1145 = vmatpush1.bf16.msra.mxu0 0
    %1146 = vmatprep.subr.bf16.mxu0 0
    %1147 = vmatpush1.bf16.msra.mxu0 0
    %1148 = vmatprep.subr.bf16.mxu0 0
    %1149 = vmatpush1.bf16.msra.mxu0 0
    %1150 = vmatprep.subr.bf16.mxu0 0
    %1151 = vmatpush1.bf16.msra.mxu0 0
    %1152 = vmatprep.subr.bf16.mxu0 0
    %1153 = vmatpush1.bf16.msra.mxu0 0
    %1154 = vmatprep.subr.bf16.mxu0 0
    %1155 = vmatpush1.bf16.msra.mxu0 0
    %1156 = vmatprep.subr.bf16.mxu0 0
    %1157 = vmatpush1.bf16.msra.mxu0 %v366
    %1158 = vmatprep.subr.bf16.mxu0 0
    %1159 = vmatpush1.bf16.msra.mxu0 %v365
    %1160 = vmatprep.subr.bf16.mxu0 0
    %1161 = vmatpush2.bf16.msra.mxu0 0
    %1162 = vmatprep.subr.bf16.mxu0 0
    %1163 = vmatpush2.bf16.msra.mxu0 0
    %1164 = vmatprep.subr.bf16.mxu0 0
    %1165 = vmatpush2.bf16.msra.mxu0 0
    %1166 = vmatprep.subr.bf16.mxu0 0
    %1167 = vmatpush2.bf16.msra.mxu0 0
    %1168 = vmatprep.subr.bf16.mxu0 0
    %1169 = vmatpush2.bf16.msra.mxu0 0
    %1170 = vmatprep.subr.bf16.mxu0 0
    %1171 = vmatpush2.bf16.msra.mxu0 0
    %1172 = vmatprep.subr.bf16.mxu0 0
    %1173 = vmatpush2.bf16.msra.mxu0 0
    %1174 = vmatprep.subr.bf16.mxu0 0
    %1175 = vmatpush2.bf16.msra.mxu0 0
    %1176 = vmatprep.mubr.bf16.mxu0 0
    %1177 = vmatmul.mubr.bf16.gmra.mxu0 %v1142
    %v1178 = vpop.f32.mrf.mxu0
    %v1179 = vadd.f32 0.0, %v1178
    %v1180 = vpop.f32.mrf.mxu0
    %v1181 = vpop.f32.mrf.mxu0
    %v1182 = vpop.f32.mrf.mxu0
    %1183 = vdwg.mxu0
    %1184 = vmatprep.subr.bf16.mxu0 0
    %1185 = vmatpush1.bf16.msra.mxu0 0
    %1186 = vmatprep.subr.bf16.mxu0 0
    %1187 = vmatpush1.bf16.msra.mxu0 0
    %1188 = vmatprep.subr.bf16.mxu0 0
    %1189 = vmatpush1.bf16.msra.mxu0 0
    %1190 = vmatprep.subr.bf16.mxu0 0
    %1191 = vmatpush1.bf16.msra.mxu0 0
    %1192 = vmatprep.subr.bf16.mxu0 0
    %1193 = vmatpush1.bf16.msra.mxu0 0
    %1194 = vmatprep.subr.bf16.mxu0 0
    %1195 = vmatpush1.bf16.msra.mxu0 0
    %1196 = vmatprep.subr.bf16.mxu0 0
    %1197 = vmatpush1.bf16.msra.mxu0 %v422
    %1198 = vmatprep.subr.bf16.mxu0 0
    %1199 = vmatpush1.bf16.msra.mxu0 %v421
    %1200 = vmatprep.subr.bf16.mxu0 0
    %1201 = vmatpush2.bf16.msra.mxu0 0
    %1202 = vmatprep.subr.bf16.mxu0 0
    %1203 = vmatpush2.bf16.msra.mxu0 0
    %1204 = vmatprep.subr.bf16.mxu0 0
    %1205 = vmatpush2.bf16.msra.mxu0 0
    %1206 = vmatprep.subr.bf16.mxu0 0
    %1207 = vmatpush2.bf16.msra.mxu0 0
    %1208 = vmatprep.subr.bf16.mxu0 0
    %1209 = vmatpush2.bf16.msra.mxu0 0
    %1210 = vmatprep.subr.bf16.mxu0 0
    %1211 = vmatpush2.bf16.msra.mxu0 0
    %1212 = vmatprep.subr.bf16.mxu0 0
    %1213 = vmatpush2.bf16.msra.mxu0 0
    %1214 = vmatprep.subr.bf16.mxu0 0
    %1215 = vmatpush2.bf16.msra.mxu0 0
    %1216 = vmatprep.mubr.bf16.mxu0 0
    %1217 = vmatmul.mubr.bf16.gmra.mxu0 %v1067
    %v1218 = vpop.f32.mrf.mxu0
    %v1219 = vadd.f32 %v1179, %v1218
    %v1220 = vpop.f32.mrf.mxu0
    %v1221 = vpop.f32.mrf.mxu0
    %v1222 = vpop.f32.mrf.mxu0
    %1223 = vdwg.mxu0
    %v1224 = vadd.f32 %v1219, %v470
    %v1225 = vxor.u32 %v1224, 2147483648
    %v1226 = vmul.f32 %v1225, 1.442695
    %v1227 = vpow.pop %v1226
    %v1228 = vadd.f32 %v1227, 1.0
    %v1229 = vrcp.pop %v1228
    %v1230 = vmul.f32 1.0, %v1229
    %v1231 = vmul.f32 %v1230, 2.0
    %v1232 = vsub.f32 %v1231, 1.0
    %v1233 = vmul.f32 %v1230, %v1055
    %1235 = vrot.lane.b32.xlu0 %v1232, 64
    %v1236 = vpop.permute.xlu0 %1235
    %v1238 = vmul.f32 %v1230, %v1236
    %1240 = vrot.lane.b32.xlu0 %v1238, 32
    %v1241 = vpop.permute.xlu0 %1240
    %v1243 = vadd.f32 %v1233, %v1241
    %v1244 = vtanh.pop %v1243
    %1246 = vrot.lane.b32.xlu0 %v1244, 64
    %v1247 = vpop.permute.xlu0 %1246
    %v1249 = vmul.f32 %v1230, %v1247
    %v1250 = vpack.c.bf16 %v1136, %v1136
    %1252 = vrot.lane.b32.xlu0 %v1250, 32
    %v1253 = vpop.permute.xlu0 %1252
    %v1255 = vsel %vm207, %v1253, 0
    %1257 = vmatprep.subr.bf16.mxu0 0
    %1258 = vmatpush1.bf16.msra.mxu0 0
    %1259 = vmatprep.subr.bf16.mxu0 0
    %1260 = vmatpush1.bf16.msra.mxu0 0
    %1261 = vmatprep.subr.bf16.mxu0 0
    %1262 = vmatpush1.bf16.msra.mxu0 0
    %1263 = vmatprep.subr.bf16.mxu0 0
    %1264 = vmatpush1.bf16.msra.mxu0 0
    %1265 = vmatprep.subr.bf16.mxu0 0
    %1266 = vmatpush1.bf16.msra.mxu0 0
    %1267 = vmatprep.subr.bf16.mxu0 0
    %1268 = vmatpush1.bf16.msra.mxu0 0
    %1269 = vmatprep.subr.bf16.mxu0 0
    %1270 = vmatpush1.bf16.msra.mxu0 %v204
    %1271 = vmatprep.subr.bf16.mxu0 0
    %1272 = vmatpush1.bf16.msra.mxu0 %v203
    %1273 = vmatprep.subr.bf16.mxu0 0
    %1274 = vmatpush2.bf16.msra.mxu0 0
    %1275 = vmatprep.subr.bf16.mxu0 0
    %1276 = vmatpush2.bf16.msra.mxu0 0
    %1277 = vmatprep.subr.bf16.mxu0 0
    %1278 = vmatpush2.bf16.msra.mxu0 0
    %1279 = vmatprep.subr.bf16.mxu0 0
    %1280 = vmatpush2.bf16.msra.mxu0 0
    %1281 = vmatprep.subr.bf16.mxu0 0
    %1282 = vmatpush2.bf16.msra.mxu0 0
    %1283 = vmatprep.subr.bf16.mxu0 0
    %1284 = vmatpush2.bf16.msra.mxu0 0
    %1285 = vmatprep.subr.bf16.mxu0 0
    %1286 = vmatpush2.bf16.msra.mxu0 0
    %1287 = vmatprep.subr.bf16.mxu0 0
    %1288 = vmatpush2.bf16.msra.mxu0 0
    %1289 = vmatprep.mubr.bf16.mxu0 0
    %1290 = vmatmul.mubr.bf16.gmra.mxu0 %v1255
    %v1291 = vpop.f32.mrf.mxu0
    %v1292 = vadd.f32 0.0, %v1291
    %v1293 = vpop.f32.mrf.mxu0
    %v1294 = vpop.f32.mrf.mxu0
    %v1295 = vpop.f32.mrf.mxu0
    %1296 = vdwg.mxu0
    %s1297 = scalar_lea.vmem [#allocation2], 48
    %v1298 = vld [vmem:[%s1297] sm:$0xff]
    %v1299 = vadd.f32 %v1298, %v1292
    %v1300 = vxor.u32 %v1299, 2147483648
    %v1301 = vmul.f32 %v1300, 1.442695
    %v1302 = vpow.pop %v1301
    %v1303 = vadd.f32 %v1302, 1.0
    %v1304 = vrcp.pop %v1303
    %v1305 = vmul.f32 1.0, %v1304
    %v1306 = vmul.f32 %v1305, 2.0
    %v1307 = vsub.f32 %v1306, 1.0
    %v1308 = vmul.f32 %v1305, %v1130
    %1310 = vrot.lane.b32.xlu0 %v1307, 64
    %v1311 = vpop.permute.xlu0 %1310
    %v1313 = vmul.f32 %v1305, %v1311
    %1315 = vrot.lane.b32.xlu0 %v1313, 32
    %v1316 = vpop.permute.xlu0 %1315
    %v1318 = vadd.f32 %v1308, %v1316
    %v1319 = vtanh.pop %v1318
    %1321 = vrot.lane.b32.xlu0 %v1319, 64
    %v1322 = vpop.permute.xlu0 %1321
    %v1324 = vmul.f32 %v1305, %v1322
    %v1325 = vpack.c.bf16 %v1249, %v1249
    %1327 = vrot.lane.b32.xlu0 %v1325, 32
    %v1328 = vpop.permute.xlu0 %1327
    %v1330 = vsel %vm207, %v1328, 0
    %1332 = vmatprep.subr.bf16.mxu0 0
    %1333 = vmatpush1.bf16.msra.mxu0 0
    %1334 = vmatprep.subr.bf16.mxu0 0
    %1335 = vmatpush1.bf16.msra.mxu0 0
    %1336 = vmatprep.subr.bf16.mxu0 0
    %1337 = vmatpush1.bf16.msra.mxu0 0
    %1338 = vmatprep.subr.bf16.mxu0 0
    %1339 = vmatpush1.bf16.msra.mxu0 0
    %1340 = vmatprep.subr.bf16.mxu0 0
    %1341 = vmatpush1.bf16.msra.mxu0 0
    %1342 = vmatprep.subr.bf16.mxu0 0
    %1343 = vmatpush1.bf16.msra.mxu0 0
    %1344 = vmatprep.subr.bf16.mxu0 0
    %1345 = vmatpush1.bf16.msra.mxu0 %v366
    %1346 = vmatprep.subr.bf16.mxu0 0
    %1347 = vmatpush1.bf16.msra.mxu0 %v365
    %1348 = vmatprep.subr.bf16.mxu0 0
    %1349 = vmatpush2.bf16.msra.mxu0 0
    %1350 = vmatprep.subr.bf16.mxu0 0
    %1351 = vmatpush2.bf16.msra.mxu0 0
    %1352 = vmatprep.subr.bf16.mxu0 0
    %1353 = vmatpush2.bf16.msra.mxu0 0
    %1354 = vmatprep.subr.bf16.mxu0 0
    %1355 = vmatpush2.bf16.msra.mxu0 0
    %1356 = vmatprep.subr.bf16.mxu0 0
    %1357 = vmatpush2.bf16.msra.mxu0 0
    %1358 = vmatprep.subr.bf16.mxu0 0
    %1359 = vmatpush2.bf16.msra.mxu0 0
    %1360 = vmatprep.subr.bf16.mxu0 0
    %1361 = vmatpush2.bf16.msra.mxu0 0
    %1362 = vmatprep.subr.bf16.mxu0 0
    %1363 = vmatpush2.bf16.msra.mxu0 0
    %1364 = vmatprep.mubr.bf16.mxu0 0
    %1365 = vmatmul.mubr.bf16.gmra.mxu0 %v1330
    %v1366 = vpop.f32.mrf.mxu0
    %v1367 = vadd.f32 0.0, %v1366
    %v1368 = vpop.f32.mrf.mxu0
    %v1369 = vpop.f32.mrf.mxu0
    %v1370 = vpop.f32.mrf.mxu0
    %1371 = vdwg.mxu0
    %1372 = vmatprep.subr.bf16.mxu0 0
    %1373 = vmatpush1.bf16.msra.mxu0 0
    %1374 = vmatprep.subr.bf16.mxu0 0
    %1375 = vmatpush1.bf16.msra.mxu0 0
    %1376 = vmatprep.subr.bf16.mxu0 0
    %1377 = vmatpush1.bf16.msra.mxu0 0
    %1378 = vmatprep.subr.bf16.mxu0 0
    %1379 = vmatpush1.bf16.msra.mxu0 0
    %1380 = vmatprep.subr.bf16.mxu0 0
    %1381 = vmatpush1.bf16.msra.mxu0 0
    %1382 = vmatprep.subr.bf16.mxu0 0
    %1383 = vmatpush1.bf16.msra.mxu0 0
    %1384 = vmatprep.subr.bf16.mxu0 0
    %1385 = vmatpush1.bf16.msra.mxu0 %v422
    %1386 = vmatprep.subr.bf16.mxu0 0
    %1387 = vmatpush1.bf16.msra.mxu0 %v421
    %1388 = vmatprep.subr.bf16.mxu0 0
    %1389 = vmatpush2.bf16.msra.mxu0 0
    %1390 = vmatprep.subr.bf16.mxu0 0
    %1391 = vmatpush2.bf16.msra.mxu0 0
    %1392 = vmatprep.subr.bf16.mxu0 0
    %1393 = vmatpush2.bf16.msra.mxu0 0
    %1394 = vmatprep.subr.bf16.mxu0 0
    %1395 = vmatpush2.bf16.msra.mxu0 0
    %1396 = vmatprep.subr.bf16.mxu0 0
    %1397 = vmatpush2.bf16.msra.mxu0 0
    %1398 = vmatprep.subr.bf16.mxu0 0
    %1399 = vmatpush2.bf16.msra.mxu0 0
    %1400 = vmatprep.subr.bf16.mxu0 0
    %1401 = vmatpush2.bf16.msra.mxu0 0
    %1402 = vmatprep.subr.bf16.mxu0 0
    %1403 = vmatpush2.bf16.msra.mxu0 0
    %1404 = vmatprep.mubr.bf16.mxu0 0
    %1405 = vmatmul.mubr.bf16.gmra.mxu0 %v1255
    %v1406 = vpop.f32.mrf.mxu0
    %v1407 = vadd.f32 %v1367, %v1406
    %v1408 = vpop.f32.mrf.mxu0
    %v1409 = vpop.f32.mrf.mxu0
    %v1410 = vpop.f32.mrf.mxu0
    %1411 = vdwg.mxu0
    %v1412 = vadd.f32 %v1407, %v470
    %v1413 = vxor.u32 %v1412, 2147483648
    %v1414 = vmul.f32 %v1413, 1.442695
    %v1415 = vpow.pop %v1414
    %v1416 = vadd.f32 %v1415, 1.0
    %v1417 = vrcp.pop %v1416
    %v1418 = vmul.f32 1.0, %v1417
    %v1419 = vmul.f32 %v1418, 2.0
    %v1420 = vsub.f32 %v1419, 1.0
    %v1421 = vmul.f32 %v1418, %v1243
    %1423 = vrot.lane.b32.xlu0 %v1420, 64
    %v1424 = vpop.permute.xlu0 %1423
    %v1426 = vmul.f32 %v1418, %v1424
    %1428 = vrot.lane.b32.xlu0 %v1426, 32
    %v1429 = vpop.permute.xlu0 %1428
    %v1431 = vadd.f32 %v1421, %v1429
    %v1432 = vtanh.pop %v1431
    %1434 = vrot.lane.b32.xlu0 %v1432, 64
    %v1435 = vpop.permute.xlu0 %1434
    %v1437 = vmul.f32 %v1418, %v1435
    %v1438 = vpack.c.bf16 %v1324, %v1324
    %1440 = vrot.lane.b32.xlu0 %v1438, 32
    %v1441 = vpop.permute.xlu0 %1440
    %v1443 = vsel %vm207, %v1441, 0
    %1445 = vmatprep.subr.bf16.mxu0 0
    %1446 = vmatpush1.bf16.msra.mxu0 0
    %1447 = vmatprep.subr.bf16.mxu0 0
    %1448 = vmatpush1.bf16.msra.mxu0 0
    %1449 = vmatprep.subr.bf16.mxu0 0
    %1450 = vmatpush1.bf16.msra.mxu0 0
    %1451 = vmatprep.subr.bf16.mxu0 0
    %1452 = vmatpush1.bf16.msra.mxu0 0
    %1453 = vmatprep.subr.bf16.mxu0 0
    %1454 = vmatpush1.bf16.msra.mxu0 0
    %1455 = vmatprep.subr.bf16.mxu0 0
    %1456 = vmatpush1.bf16.msra.mxu0 0
    %1457 = vmatprep.subr.bf16.mxu0 0
    %1458 = vmatpush1.bf16.msra.mxu0 %v204
    %1459 = vmatprep.subr.bf16.mxu0 0
    %1460 = vmatpush1.bf16.msra.mxu0 %v203
    %1461 = vmatprep.subr.bf16.mxu0 0
    %1462 = vmatpush2.bf16.msra.mxu0 0
    %1463 = vmatprep.subr.bf16.mxu0 0
    %1464 = vmatpush2.bf16.msra.mxu0 0
    %1465 = vmatprep.subr.bf16.mxu0 0
    %1466 = vmatpush2.bf16.msra.mxu0 0
    %1467 = vmatprep.subr.bf16.mxu0 0
    %1468 = vmatpush2.bf16.msra.mxu0 0
    %1469 = vmatprep.subr.bf16.mxu0 0
    %1470 = vmatpush2.bf16.msra.mxu0 0
    %1471 = vmatprep.subr.bf16.mxu0 0
    %1472 = vmatpush2.bf16.msra.mxu0 0
    %1473 = vmatprep.subr.bf16.mxu0 0
    %1474 = vmatpush2.bf16.msra.mxu0 0
    %1475 = vmatprep.subr.bf16.mxu0 0
    %1476 = vmatpush2.bf16.msra.mxu0 0
    %1477 = vmatprep.mubr.bf16.mxu0 0
    %1478 = vmatmul.mubr.bf16.gmra.mxu0 %v1443
    %v1479 = vpop.f32.mrf.mxu0
    %v1480 = vadd.f32 0.0, %v1479
    %v1481 = vpop.f32.mrf.mxu0
    %v1482 = vpop.f32.mrf.mxu0
    %v1483 = vpop.f32.mrf.mxu0
    %1484 = vdwg.mxu0
    %s1485 = scalar_lea.vmem [#allocation2], 56
    %v1486 = vld [vmem:[%s1485] sm:$0xff]
    %v1487 = vadd.f32 %v1486, %v1480
    %v1488 = vxor.u32 %v1487, 2147483648
    %v1489 = vmul.f32 %v1488, 1.442695
    %v1490 = vpow.pop %v1489
    %v1491 = vadd.f32 %v1490, 1.0
    %v1492 = vrcp.pop %v1491
    %v1493 = vmul.f32 1.0, %v1492
    %v1494 = vmul.f32 %v1493, 2.0
    %v1495 = vsub.f32 %v1494, 1.0
    %v1496 = vmul.f32 %v1493, %v1318
    %1498 = vrot.lane.b32.xlu0 %v1495, 64
    %v1499 = vpop.permute.xlu0 %1498
    %v1501 = vmul.f32 %v1493, %v1499
    %1503 = vrot.lane.b32.xlu0 %v1501, 32
    %v1504 = vpop.permute.xlu0 %1503
    %v1506 = vadd.f32 %v1496, %v1504
    %v1507 = vtanh.pop %v1506
    %1509 = vrot.lane.b32.xlu0 %v1507, 64
    %v1510 = vpop.permute.xlu0 %1509
    %v1512 = vmul.f32 %v1493, %v1510
    %v1513 = vpack.c.bf16 %v1437, %v1437
    %1515 = vrot.lane.b32.xlu0 %v1513, 32
    %v1516 = vpop.permute.xlu0 %1515
    %v1518 = vsel %vm207, %v1516, 0
    %1520 = vmatprep.subr.bf16.mxu0 0
    %1521 = vmatpush1.bf16.msra.mxu0 0
    %1522 = vmatprep.subr.bf16.mxu0 0
    %1523 = vmatpush1.bf16.msra.mxu0 0
    %1524 = vmatprep.subr.bf16.mxu0 0
    %1525 = vmatpush1.bf16.msra.mxu0 0
    %1526 = vmatprep.subr.bf16.mxu0 0
    %1527 = vmatpush1.bf16.msra.mxu0 0
    %1528 = vmatprep.subr.bf16.mxu0 0
    %1529 = vmatpush1.bf16.msra.mxu0 0
    %1530 = vmatprep.subr.bf16.mxu0 0
    %1531 = vmatpush1.bf16.msra.mxu0 0
    %1532 = vmatprep.subr.bf16.mxu0 0
    %1533 = vmatpush1.bf16.msra.mxu0 %v366
    %1534 = vmatprep.subr.bf16.mxu0 0
    %1535 = vmatpush1.bf16.msra.mxu0 %v365
    %1536 = vmatprep.subr.bf16.mxu0 0
    %1537 = vmatpush2.bf16.msra.mxu0 0
    %1538 = vmatprep.subr.bf16.mxu0 0
    %1539 = vmatpush2.bf16.msra.mxu0 0
    %1540 = vmatprep.subr.bf16.mxu0 0
    %1541 = vmatpush2.bf16.msra.mxu0 0
    %1542 = vmatprep.subr.bf16.mxu0 0
    %1543 = vmatpush2.bf16.msra.mxu0 0
    %1544 = vmatprep.subr.bf16.mxu0 0
    %1545 = vmatpush2.bf16.msra.mxu0 0
    %1546 = vmatprep.subr.bf16.mxu0 0
    %1547 = vmatpush2.bf16.msra.mxu0 0
    %1548 = vmatprep.subr.bf16.mxu0 0
    %1549 = vmatpush2.bf16.msra.mxu0 0
    %1550 = vmatprep.subr.bf16.mxu0 0
    %1551 = vmatpush2.bf16.msra.mxu0 0
    %1552 = vmatprep.mubr.bf16.mxu0 0
    %1553 = vmatmul.mubr.bf16.gmra.mxu0 %v1518
    %v1554 = vpop.f32.mrf.mxu0
    %v1555 = vadd.f32 0.0, %v1554
    %v1556 = vpop.f32.mrf.mxu0
    %v1557 = vpop.f32.mrf.mxu0
    %v1558 = vpop.f32.mrf.mxu0
    %1559 = vdwg.mxu0
    %1560 = vmatprep.subr.bf16.mxu0 0
    %1561 = vmatpush1.bf16.msra.mxu0 0
    %1562 = vmatprep.subr.bf16.mxu0 0
    %1563 = vmatpush1.bf16.msra.mxu0 0
    %1564 = vmatprep.subr.bf16.mxu0 0
    %1565 = vmatpush1.bf16.msra.mxu0 0
    %1566 = vmatprep.subr.bf16.mxu0 0
    %1567 = vmatpush1.bf16.msra.mxu0 0
    %1568 = vmatprep.subr.bf16.mxu0 0
    %1569 = vmatpush1.bf16.msra.mxu0 0
    %1570 = vmatprep.subr.bf16.mxu0 0
    %1571 = vmatpush1.bf16.msra.mxu0 0
    %1572 = vmatprep.subr.bf16.mxu0 0
    %1573 = vmatpush1.bf16.msra.mxu0 %v422
    %1574 = vmatprep.subr.bf16.mxu0 0
    %1575 = vmatpush1.bf16.msra.mxu0 %v421
    %1576 = vmatprep.subr.bf16.mxu0 0
    %1577 = vmatpush2.bf16.msra.mxu0 0
    %1578 = vmatprep.subr.bf16.mxu0 0
    %1579 = vmatpush2.bf16.msra.mxu0 0
    %1580 = vmatprep.subr.bf16.mxu0 0
    %1581 = vmatpush2.bf16.msra.mxu0 0
    %1582 = vmatprep.subr.bf16.mxu0 0
    %1583 = vmatpush2.bf16.msra.mxu0 0
    %1584 = vmatprep.subr.bf16.mxu0 0
    %1585 = vmatpush2.bf16.msra.mxu0 0
    %1586 = vmatprep.subr.bf16.mxu0 0
    %1587 = vmatpush2.bf16.msra.mxu0 0
    %1588 = vmatprep.subr.bf16.mxu0 0
    %1589 = vmatpush2.bf16.msra.mxu0 0
    %1590 = vmatprep.subr.bf16.mxu0 0
    %1591 = vmatpush2.bf16.msra.mxu0 0
    %1592 = vmatprep.mubr.bf16.mxu0 0
    %1593 = vmatmul.mubr.bf16.gmra.mxu0 %v1443
    %v1594 = vpop.f32.mrf.mxu0
    %v1595 = vadd.f32 %v1555, %v1594
    %v1596 = vpop.f32.mrf.mxu0
    %v1597 = vpop.f32.mrf.mxu0
    %v1598 = vpop.f32.mrf.mxu0
    %1599 = vdwg.mxu0
    %v1600 = vadd.f32 %v1595, %v470
    %v1601 = vxor.u32 %v1600, 2147483648
    %v1602 = vmul.f32 %v1601, 1.442695
    %v1603 = vpow.pop %v1602
    %v1604 = vadd.f32 %v1603, 1.0
    %v1605 = vrcp.pop %v1604
    %v1606 = vmul.f32 1.0, %v1605
    %v1607 = vmul.f32 %v1606, 2.0
    %v1608 = vsub.f32 %v1607, 1.0
    %v1609 = vmul.f32 %v1606, %v1431
    %1611 = vrot.lane.b32.xlu0 %v1608, 64
    %v1612 = vpop.permute.xlu0 %1611
    %v1614 = vmul.f32 %v1606, %v1612
    %1616 = vrot.lane.b32.xlu0 %v1614, 32
    %v1617 = vpop.permute.xlu0 %1616
    %v1619 = vadd.f32 %v1609, %v1617
    %v1620 = vtanh.pop %v1619
    %1622 = vrot.lane.b32.xlu0 %v1620, 64
    %v1623 = vpop.permute.xlu0 %1622
    %v1625 = vmul.f32 %v1606, %v1623
    %v1626 = vpack.c.bf16 %v1625, %v1625
    %1628 = vrot.lane.b32.xlu0 %v1626, 32
    %v1629 = vpop.permute.xlu0 %1628
    %v1631 = vsel %vm207, %v1629, 0
    %1633 = vmatprep.subr.bf16.mxu0 0
    %1634 = vmatpush1.bf16.msra.mxu0 0
    %1635 = vmatprep.subr.bf16.mxu0 0
    %1636 = vmatpush1.bf16.msra.mxu0 0
    %1637 = vmatprep.subr.bf16.mxu0 0
    %1638 = vmatpush1.bf16.msra.mxu0 0
    %1639 = vmatprep.subr.bf16.mxu0 0
    %1640 = vmatpush1.bf16.msra.mxu0 0
    %1641 = vmatprep.subr.bf16.mxu0 0
    %1642 = vmatpush1.bf16.msra.mxu0 0
    %1643 = vmatprep.subr.bf16.mxu0 0
    %1644 = vmatpush1.bf16.msra.mxu0 0
    %1645 = vmatprep.subr.bf16.mxu0 0
    %1646 = vmatpush1.bf16.msra.mxu0 %v366
    %1647 = vmatprep.subr.bf16.mxu0 0
    %1648 = vmatpush1.bf16.msra.mxu0 %v365
    %1649 = vmatprep.subr.bf16.mxu0 0
    %1650 = vmatpush2.bf16.msra.mxu0 0
    %1651 = vmatprep.subr.bf16.mxu0 0
    %1652 = vmatpush2.bf16.msra.mxu0 0
    %1653 = vmatprep.subr.bf16.mxu0 0
    %1654 = vmatpush2.bf16.msra.mxu0 0
    %1655 = vmatprep.subr.bf16.mxu0 0
    %1656 = vmatpush2.bf16.msra.mxu0 0
    %1657 = vmatprep.subr.bf16.mxu0 0
    %1658 = vmatpush2.bf16.msra.mxu0 0
    %1659 = vmatprep.subr.bf16.mxu0 0
    %1660 = vmatpush2.bf16.msra.mxu0 0
    %1661 = vmatprep.subr.bf16.mxu0 0
    %1662 = vmatpush2.bf16.msra.mxu0 0
    %1663 = vmatprep.subr.bf16.mxu0 0
    %1664 = vmatpush2.bf16.msra.mxu0 0
    %1665 = vmatprep.mubr.bf16.mxu0 0
    %1666 = vmatmul.mubr.bf16.gmra.mxu0 %v1631
    %v1667 = vpop.f32.mrf.mxu0
    %v1668 = vadd.f32 0.0, %v1667
    %v1669 = vpop.f32.mrf.mxu0
    %v1670 = vpop.f32.mrf.mxu0
    %v1671 = vpop.f32.mrf.mxu0
    %1672 = vdwg.mxu0
    %v1673 = vpack.c.bf16 %v1512, %v1512
    %1675 = vrot.lane.b32.xlu0 %v1673, 32
    %v1676 = vpop.permute.xlu0 %1675
    %v1678 = vsel %vm207, %v1676, 0
    %1680 = vmatprep.subr.bf16.mxu0 0
    %1681 = vmatpush1.bf16.msra.mxu0 0
    %1682 = vmatprep.subr.bf16.mxu0 0
    %1683 = vmatpush1.bf16.msra.mxu0 0
    %1684 = vmatprep.subr.bf16.mxu0 0
    %1685 = vmatpush1.bf16.msra.mxu0 0
    %1686 = vmatprep.subr.bf16.mxu0 0
    %1687 = vmatpush1.bf16.msra.mxu0 0
    %1688 = vmatprep.subr.bf16.mxu0 0
    %1689 = vmatpush1.bf16.msra.mxu0 0
    %1690 = vmatprep.subr.bf16.mxu0 0
    %1691 = vmatpush1.bf16.msra.mxu0 0
    %1692 = vmatprep.subr.bf16.mxu0 0
    %1693 = vmatpush1.bf16.msra.mxu0 %v422
    %1694 = vmatprep.subr.bf16.mxu0 0
    %1695 = vmatpush1.bf16.msra.mxu0 %v421
    %1696 = vmatprep.subr.bf16.mxu0 0
    %1697 = vmatpush2.bf16.msra.mxu0 0
    %1698 = vmatprep.subr.bf16.mxu0 0
    %1699 = vmatpush2.bf16.msra.mxu0 0
    %1700 = vmatprep.subr.bf16.mxu0 0
    %1701 = vmatpush2.bf16.msra.mxu0 0
    %1702 = vmatprep.subr.bf16.mxu0 0
    %1703 = vmatpush2.bf16.msra.mxu0 0
    %1704 = vmatprep.subr.bf16.mxu0 0
    %1705 = vmatpush2.bf16.msra.mxu0 0
    %1706 = vmatprep.subr.bf16.mxu0 0
    %1707 = vmatpush2.bf16.msra.mxu0 0
    %1708 = vmatprep.subr.bf16.mxu0 0
    %1709 = vmatpush2.bf16.msra.mxu0 0
    %1710 = vmatprep.subr.bf16.mxu0 0
    %1711 = vmatpush2.bf16.msra.mxu0 0
    %1712 = vmatprep.mubr.bf16.mxu0 0
    %1713 = vmatmul.mubr.bf16.gmra.mxu0 %v1678
    %v1714 = vpop.f32.mrf.mxu0
    %v1715 = vadd.f32 %v1668, %v1714
    %v1716 = vpop.f32.mrf.mxu0
    %v1717 = vpop.f32.mrf.mxu0
    %v1718 = vpop.f32.mrf.mxu0
    %1719 = vdwg.mxu0
    %v1720 = vadd.f32 %v1715, %v470
    %v1721 = vxor.u32 %v1720, 2147483648
    %v1722 = vmul.f32 %v1721, 1.442695
    %v1723 = vpow.pop %v1722
    %v1724 = vadd.f32 %v1723, 1.0
    %v1725 = vrcp.pop %v1724
    %v1726 = vmul.f32 1.0, %v1725
    %v1727 = vmul.f32 %v1726, 2.0
    %v1728 = vsub.f32 %v1727, 1.0
    %v1729 = vmul.f32 %v1726, %v1619
    %1731 = vrot.lane.b32.xlu0 %v1728, 64
    %v1732 = vpop.permute.xlu0 %1731
    %v1734 = vmul.f32 %v1726, %v1732
    %1736 = vrot.lane.b32.xlu0 %v1734, 32
    %v1737 = vpop.permute.xlu0 %1736
    %v1739 = vadd.f32 %v1729, %v1737
    %v1740 = vtanh.pop %v1739
    %1742 = vrot.lane.b32.xlu0 %v1740, 64
    %v1743 = vpop.permute.xlu0 %1742
    %v1745 = vmul.f32 %v1726, %v1743
    %v1746 = vpack.c.bf16 %v1745, %v1745
    %v1747 = vld [vmem:[#allocation6] sm:$0xf]
    %v1748 = vld [vmem:[#allocation6 + $0x4] sm:$0xf]
    %v1749 = vld [vmem:[#allocation6 + $0x8] sm:$0xf]
    %v1750 = vld [vmem:[#allocation6 + $0xc] sm:$0xf]
    %v1751 = vld [vmem:[%s8] sm:$0x1]
    %v1753 = vlaneseq
    %v1754 = vshrl.u32 %v1753, 7
    %v1755 = vsub.s32 0, %v1754
    %v1756 = vrot.slane %v1751, %v1755
    %1759 = vrot.lane.b32.xlu0 %v1746, 32
    %v1760 = vpop.permute.xlu0 %1759
    %v1765 = vunpack.c.l.b16 %v1747
    %v1766 = vunpack.c.l.b16 %v1748
    %v1767 = vunpack.c.l.b16 %v1749
    %v1768 = vunpack.c.l.b16 %v1750
    %v1769 = vpack.c.b16 %v1766, %v1765
    %v1770 = vpack.c.b16 %v1768, %v1767
    %v1774 = vsel %vm207, %v1760, 0
    %1776 = vmatprep.subr.bf16.mxu0 0
    %1777 = vmatpush1.bf16.msra.mxu0 0
    %1778 = vmatprep.subr.bf16.mxu0 0
    %1779 = vmatpush1.bf16.msra.mxu0 0
    %1780 = vmatprep.subr.bf16.mxu0 0
    %1781 = vmatpush1.bf16.msra.mxu0 0
    %1782 = vmatprep.subr.bf16.mxu0 0
    %1783 = vmatpush1.bf16.msra.mxu0 0
    %1784 = vmatprep.subr.bf16.mxu0 0
    %1785 = vmatpush1.bf16.msra.mxu0 0
    %1786 = vmatprep.subr.bf16.mxu0 0
    %1787 = vmatpush1.bf16.msra.mxu0 0
    %1788 = vmatprep.subr.bf16.mxu0 0
    %1789 = vmatpush1.bf16.msra.mxu0 %v1770
    %1790 = vmatprep.subr.bf16.mxu0 0
    %1791 = vmatpush1.bf16.msra.mxu0 %v1769
    %1792 = vmatprep.subr.bf16.mxu0 0
    %1793 = vmatpush2.bf16.msra.mxu0 0
    %1794 = vmatprep.subr.bf16.mxu0 0
    %1795 = vmatpush2.bf16.msra.mxu0 0
    %1796 = vmatprep.subr.bf16.mxu0 0
    %1797 = vmatpush2.bf16.msra.mxu0 0
    %1798 = vmatprep.subr.bf16.mxu0 0
    %1799 = vmatpush2.bf16.msra.mxu0 0
    %1800 = vmatprep.subr.bf16.mxu0 0
    %1801 = vmatpush2.bf16.msra.mxu0 0
    %1802 = vmatprep.subr.bf16.mxu0 0
    %1803 = vmatpush2.bf16.msra.mxu0 0
    %1804 = vmatprep.subr.bf16.mxu0 0
    %1805 = vmatpush2.bf16.msra.mxu0 0
    %1806 = vmatprep.subr.bf16.mxu0 0
    %1807 = vmatpush2.bf16.msra.mxu0 0
    %1808 = vmatprep.mubr.bf16.mxu0 0
    %1809 = vmatmul.mubr.bf16.gmra.mxu0 %v1774
    %v1810 = vpop.f32.mrf.mxu0
    %v1811 = vadd.f32 %v1756, %v1810
    %v1812 = vpop.f32.mrf.mxu0
    %v1813 = vpop.f32.mrf.mxu0
    %v1814 = vpop.f32.mrf.mxu0
    %1815 = vdwg.mxu0
    %1816 = vst [vmem:[#allocation8] sm:$0xff] %v1811
    // Predicated region
    $region46: #{tpu_custom_call.1} parent=1 // pred_check
      _
    $region47: #{tpu_custom_call.1} parent=1 // pred_check_branch
      %1818 = sbr.rel (0) target = $region49
    $region48: #{tpu_custom_call.1} parent=1 // pred_region
      %s1820 = ssub.s32 128, 128
      %1821 = vsyncadd [#allocation5], %s1820
      %s1823 = sshll.u32 [#allocation8], 4
      %s1824 = int_to_ptr.vmem [resolvable:$true] %s1823
      %1826 = dma.vmem_to_hbm [thread:$0]  %s1824, 128, %s9, [#allocation5]
    $region49: #{tpu_custom_call.1} parent=1 // pred_fallthru
      _
    // Predicated region
    $region50: #{tpu_custom_call.1} parent=1 // pred_check
      _
    $region51: #{tpu_custom_call.1} parent=1 // pred_check_branch
      %1828 = sbr.rel (0) target = $region53
    $region52: #{tpu_custom_call.1} parent=1 // pred_region
      %1829 = dma.done [#allocation5], 128
    $region53: #{tpu_custom_call.1} parent=1 // pred_fallthru
      _
    %1830 = vsyncpa [#allocation4], 1
    %1831 = vsyncpa [#allocation7], 1
    %1832 = vsyncpa [#allocation5], 1

</llo_original>
